<compile_context>
chip_gen: v7x
topology: tpu7x:2x2x1
jax: 0.10.0
libtpu: 0.0.40
codegen_flags: <defaults>
</compile_context>

<pallas_src>
import jax
import jax.numpy as jnp
from jax.experimental import pallas as pl
from jax.experimental.pallas import tpu as pltpu

D_IN, HIDDEN, CLASSES = 32, 64, 16

# Packed output slab layout (256 lanes = 2 x 128, lane-dense writeback):
#   lanes [  0: 64) h1        (pre-activation of layer 0)
#   lanes [ 64:128) a1        (tanh output)
#   lanes [128:144) logits    (pre-softmax)
#   lanes [144:160) probs     (softmax output)
#   lane  [160:161) nll       (per-row cross-entropy)
#   lanes [161:256) pad       (uninitialized, never read)
OFF_H1 = 0
OFF_A1 = HIDDEN
OFF_LOGITS = 128
OFF_PROBS = OFF_LOGITS + CLASSES
OFF_NLL = OFF_PROBS + CLASSES
SLAB = 256


def mlp_forward_kernel(x_ref, w1_ref, b1_ref, w2_ref, b2_ref, y_ref, out_ref):
    x = x_ref[...]                                                   # [bt, D_IN]

    # Layer 0: nn.Linear(D_IN, HIDDEN)  (MXU, f32 accumulation)
    h1 = jnp.dot(x, w1_ref[...], preferred_element_type=jnp.float32) + b1_ref[...]
    # Layer 1: nn.Tanh (EUP)
    a1 = jnp.tanh(h1)

    # Layer 2: nn.Linear(HIDDEN, CLASSES) -> logits
    a1_mm = a1.astype(w2_ref.dtype)        # no-op in the f32 path
    logits = jnp.dot(a1_mm, w2_ref[...], preferred_element_type=jnp.float32) + b2_ref[...]

    # Layer 3: nn.Softmax(dim=-1), max-stabilized.  Exact f32 reciprocal:
    # the kernel is HBM-writeback bound, so the divide is not on the critical
    # path (approx=True would use the EUP vrcp but risks the 1e-5 check).
    m = jnp.max(logits, axis=-1, keepdims=True)                      # [bt, 1]
    e = jnp.exp(logits - m)
    s = jnp.sum(e, axis=-1, keepdims=True)                           # [bt, 1]
    probs = e * pl.reciprocal(s, approx=False)

    # Per-row cross-entropy on the pre-softmax logits vs integer labels
    # (what NeuralNetworkModel.forward does when the last layer is Softmax).
    lse = m + jnp.log(s)                                             # [bt, 1]
    labels = y_ref[...]                                              # [bt, 1] int32
    cls_idx = jax.lax.broadcasted_iota(jnp.int32, logits.shape, 1)   # [bt, C]
    picked = jnp.sum(jnp.where(cls_idx == labels, logits, 0.0),
                     axis=-1, keepdims=True)                         # [bt, 1]
    nll = lse - picked                                               # [bt, 1]

    # Packed, lane-dense output slab.  No zero-fill: pad lanes [161:256) are
    # intentionally left uninitialized (nothing reads them); zeroing them
    # would waste the scarce vector-store slot.
    out_ref[:, OFF_H1:OFF_H1 + HIDDEN] = h1
    out_ref[:, OFF_A1:OFF_A1 + HIDDEN] = a1
    out_ref[:, OFF_LOGITS:OFF_LOGITS + CLASSES] = logits
    out_ref[:, OFF_PROBS:OFF_PROBS + CLASSES] = probs
    out_ref[:, OFF_NLL:OFF_NLL + 1] = nll


def mlp_forward_packed(x, w1, b1, w2, b2, labels, *, bt=None, use_bf16=False):
    """Runs the fused MLP forward + cross-entropy kernel.

    Returns the packed [B, 256] f32 slab (see layout constants above).
    Consumers should index it lazily; re-materializing every section as a
    separate array roughly doubles the HBM traffic the kernel just minimized.
    """
    b_total = x.shape[0]
    if bt is None:
        # Overhead-dominated at small/medium batch: default to exactly 2 grid
        # steps (one batch tile per v7x TensorCore via the "parallel" axis).
        # Only tile finer once per-tile DMA time dwarfs the ~0.35us fixed
        # per-step overhead (tens of thousands of rows).
        bt = b_total // 2 if (b_total >= 16 and b_total % 16 == 0) else b_total
        while bt > 4096 and b_total % (bt // 2) == 0:
            bt //= 2   # keep double-buffered tiles comfortably inside VMEM
    assert b_total % bt == 0 and bt % 8 == 0, \
        "batch must tile into (bt % 8 == 0) blocks"
    grid = (b_total // bt,)

    if use_bf16:
        # v6e/v7x MXU fast path: cast once here (weights are VMEM-resident
        # across the grid, so an in-kernel cast would redo the work every
        # step) and halve the x input DMA.  Accumulation stays f32.
        x = x.astype(jnp.bfloat16)
        w1 = w1.astype(jnp.bfloat16)
        w2 = w2.astype(jnp.bfloat16)

    return pl.pallas_call(
        mlp_forward_kernel,
        out_shape=jax.ShapeDtypeStruct((b_total, SLAB), jnp.float32),
        grid=grid,
        in_specs=[
            # x / labels tile along the batch grid axis.
            pl.BlockSpec((bt, D_IN), lambda i: (i, 0)),
            # Weights & biases stay VMEM-resident: index_map ignores grid index.
            pl.BlockSpec((D_IN, HIDDEN), lambda i: (0, 0)),
            pl.BlockSpec((1, HIDDEN), lambda i: (0, 0)),
            pl.BlockSpec((HIDDEN, CLASSES), lambda i: (0, 0)),
            pl.BlockSpec((1, CLASSES), lambda i: (0, 0)),
            pl.BlockSpec((bt, 1), lambda i: (i, 0)),
        ],
        out_specs=pl.BlockSpec((bt, SLAB), lambda i: (i, 0)),
        compiler_params=pltpu.CompilerParams(
            # Batch tiles are independent -> shard across v7x's two TensorCores.
            dimension_semantics=("parallel",),
        ),
    )(x, w1, b1.reshape(1, HIDDEN), w2, b2.reshape(1, CLASSES),
      labels.reshape(b_total, 1).astype(jnp.int32))


def unpack_activations(out):
    """Convenience unpack of the slab into the per-layer activations that
    NeuralNetworkModel.forward collects, plus the scalar cross-entropy cost.
    Note: under jit this reads the slab back from HBM; prefer indexing the
    slab directly in performance-critical consumers."""
    h1 = out[:, OFF_H1:OFF_H1 + HIDDEN]
    a1 = out[:, OFF_A1:OFF_A1 + HIDDEN]
    logits = out[:, OFF_LOGITS:OFF_LOGITS + CLASSES]
    probs = out[:, OFF_PROBS:OFF_PROBS + CLASSES]
    cost = jnp.mean(out[:, OFF_NLL])
    return h1, a1, logits, probs, cost


def mlp_forward(x, w1, b1, w2, b2, labels, *, bt=None, use_bf16=False):
    return unpack_activations(
        mlp_forward_packed(x, w1, b1, w2, b2, labels, bt=bt, use_bf16=use_bf16))


def reference_forward(x, w1, b1, w2, b2, labels):
    h1 = x @ w1 + b1
    a1 = jnp.tanh(h1)
    logits = a1 @ w2 + b2
    probs = jax.nn.softmax(logits, axis=-1)
    lse = jax.scipy.special.logsumexp(logits, axis=-1)
    picked = logits[jnp.arange(x.shape[0]), labels]
    cost = jnp.mean(lse - picked)
    return h1, a1, logits, probs, cost


if __name__ == "__main__":
    # Small demo batch; default tiling gives exactly 2 grid steps (bt = 256).
    B_TOTAL = 512

    key = jax.random.PRNGKey(0)
    kx, kw1, kb1, kw2, kb2, ky = jax.random.split(key, 6)

    x = jax.random.normal(kx, (B_TOTAL, D_IN), dtype=jnp.float32)
    w1 = jax.random.normal(kw1, (D_IN, HIDDEN), dtype=jnp.float32) * 0.1
    b1 = jax.random.normal(kb1, (HIDDEN,), dtype=jnp.float32) * 0.01
    w2 = jax.random.normal(kw2, (HIDDEN, CLASSES), dtype=jnp.float32) * 0.1
    b2 = jax.random.normal(kb2, (CLASSES,), dtype=jnp.float32) * 0.01
    labels = jax.random.randint(ky, (B_TOTAL,), 0, CLASSES, dtype=jnp.int32)

    # use_bf16=True is the v6e/v7x MXU path (casts done once in the wrapper);
    # keep f32 here so the 1e-5 check against the pure-JAX reference holds
    # (and it is the right choice on v5e, whose VPU/EUP have no bf16 path).
    h1, a1, logits, probs, cost = mlp_forward(x, w1, b1, w2, b2, labels,
                                              use_bf16=False)
    jax.block_until_ready(probs)
    jax.block_until_ready(cost)

    rh1, ra1, rlogits, rprobs, rcost = reference_forward(x, w1, b1, w2, b2, labels)
    assert jnp.allclose(h1, rh1, atol=1e-5)
    assert jnp.allclose(a1, ra1, atol=1e-5)
    assert jnp.allclose(logits, rlogits, atol=1e-5)
    assert jnp.allclose(probs, rprobs, atol=1e-5)
    assert jnp.allclose(cost, rcost, atol=1e-5)

    print("KERNEL_OK")
</pallas_src>

<mosaic_0001>
module attributes {stable_mosaic.version = 11 : i64} {
  func.func @mlp_forward_kernel(%arg0: i32, %arg1: memref<256x32xf32, #tpu.memory_space<vmem>>, %arg2: memref<32x64xf32, #tpu.memory_space<vmem>>, %arg3: memref<1x64xf32, #tpu.memory_space<vmem>>, %arg4: memref<64x16xf32, #tpu.memory_space<vmem>>, %arg5: memref<1x16xf32, #tpu.memory_space<vmem>>, %arg6: memref<256x1xi32, #tpu.memory_space<vmem>>, %arg7: memref<256x256xf32, #tpu.memory_space<vmem>>) attributes {dimension_semantics = [#tpu.dimension_semantics<parallel>], iteration_bounds = array<i64: 2>, scalar_prefetch = 0 : i64, scratch_operands = 0 : i64, tpu.core_type = #tpu.core_type<tc>, window_params = [{transform_indices = @transform_0, window_bounds = array<i64: 256, 32>}, {pipeline_mode = #tpu.pipeline_mode<synchronous>, transform_indices = @transform_1, window_bounds = array<i64: 32, 64>}, {pipeline_mode = #tpu.pipeline_mode<synchronous>, transform_indices = @transform_2, window_bounds = array<i64: 1, 64>}, {pipeline_mode = #tpu.pipeline_mode<synchronous>, transform_indices = @transform_3, window_bounds = array<i64: 64, 16>}, {pipeline_mode = #tpu.pipeline_mode<synchronous>, transform_indices = @transform_4, window_bounds = array<i64: 1, 16>}, {transform_indices = @transform_5, window_bounds = array<i64: 256, 1>}, {transform_indices = @transform_6, window_bounds = array<i64: 256, 256>}]} {
    %c0 = arith.constant 0 : index
    %c0_0 = arith.constant 0 : index
    %0 = vector.load %arg1[%c0, %c0_0] : memref<256x32xf32, #tpu.memory_space<vmem>>, vector<256x32xf32>
    %c0_1 = arith.constant 0 : index
    %c0_2 = arith.constant 0 : index
    %1 = vector.load %arg2[%c0_1, %c0_2] : memref<32x64xf32, #tpu.memory_space<vmem>>, vector<32x64xf32>
    %cst = arith.constant dense<0.000000e+00> : vector<256x64xf32>
    %2 = tpu.matmul %0, %1, %cst {dimension_numbers = #tpu.dot_dimension_numbers<[1], [0], [0], [1], [0, 0, 1, 1], [], []>} : vector<256x32xf32>, vector<32x64xf32>, vector<256x64xf32> -> vector<256x64xf32>
    %c0_3 = arith.constant 0 : index
    %c0_4 = arith.constant 0 : index
    %3 = vector.load %arg3[%c0_3, %c0_4] : memref<1x64xf32, #tpu.memory_space<vmem>>, vector<1x64xf32>
    %4 = vector.broadcast %3 : vector<1x64xf32> to vector<256x64xf32>
    %5 = arith.addf %2, %4 : vector<256x64xf32>
    %6 = math.tanh %5 : vector<256x64xf32>
    %c0_5 = arith.constant 0 : index
    %c0_6 = arith.constant 0 : index
    %7 = vector.load %arg4[%c0_5, %c0_6] : memref<64x16xf32, #tpu.memory_space<vmem>>, vector<64x16xf32>
    %cst_7 = arith.constant dense<0.000000e+00> : vector<256x16xf32>
    %8 = tpu.matmul %6, %7, %cst_7 {dimension_numbers = #tpu.dot_dimension_numbers<[1], [0], [0], [1], [0, 0, 1, 1], [], []>} : vector<256x64xf32>, vector<64x16xf32>, vector<256x16xf32> -> vector<256x16xf32>
    %c0_8 = arith.constant 0 : index
    %c0_9 = arith.constant 0 : index
    %9 = vector.load %arg5[%c0_8, %c0_9] : memref<1x16xf32, #tpu.memory_space<vmem>>, vector<1x16xf32>
    %10 = vector.broadcast %9 : vector<1x16xf32> to vector<256x16xf32>
    %11 = arith.addf %8, %10 : vector<256x16xf32>
    %cst_10 = arith.constant dense<0xFF800000> : vector<256xf32>
    %12 = vector.multi_reduction <maximumf>, %11, %cst_10 [1] : vector<256x16xf32> to vector<256xf32>
    %13 = vector.shape_cast %12 : vector<256xf32> to vector<256x1xf32>
    %14 = vector.broadcast %13 : vector<256x1xf32> to vector<256x16xf32>
    %15 = arith.subf %11, %14 : vector<256x16xf32>
    %16 = math.exp %15 : vector<256x16xf32>
    %cst_11 = arith.constant dense<0.000000e+00> : vector<256xf32>
    %17 = vector.multi_reduction <add>, %16, %cst_11 [1] : vector<256x16xf32> to vector<256xf32>
    %18 = vector.shape_cast %17 : vector<256xf32> to vector<256x1xf32>
    %19 = tpu.reciprocal %18 : vector<256x1xf32> -> vector<256x1xf32>
    %20 = vector.broadcast %19 : vector<256x1xf32> to vector<256x16xf32>
    %21 = arith.mulf %16, %20 : vector<256x16xf32>
    %22 = math.log %18 : vector<256x1xf32>
    %23 = arith.addf %13, %22 : vector<256x1xf32>
    %c0_12 = arith.constant 0 : index
    %c0_13 = arith.constant 0 : index
    %24 = vector.load %arg6[%c0_12, %c0_13] : memref<256x1xi32, #tpu.memory_space<vmem>>, vector<256x1xi32>
    %25 = tpu.iota {dimensions = array<i32: 1>} : vector<256x16xi32>
    %26 = vector.broadcast %24 : vector<256x1xi32> to vector<256x16xi32>
    %27 = arith.cmpi eq, %25, %26 : vector<256x16xi32>
    %cst_14 = arith.constant 0.000000e+00 : f32
    %28 = vector.broadcast %cst_14 : f32 to vector<256x16xf32>
    %29 = arith.select %27, %11, %28 : vector<256x16xi1>, vector<256x16xf32>
    %cst_15 = arith.constant dense<0.000000e+00> : vector<256xf32>
    %30 = vector.multi_reduction <add>, %29, %cst_15 [1] : vector<256x16xf32> to vector<256xf32>
    %31 = vector.shape_cast %30 : vector<256xf32> to vector<256x1xf32>
    %32 = arith.subf %23, %31 : vector<256x1xf32>
    %c0_16 = arith.constant 0 : index
    %c0_17 = arith.constant 0 : index
    %33 = vector.load %arg7[%c0_16, %c0_17] : memref<256x256xf32, #tpu.memory_space<vmem>>, vector<256x64xf32>
    tpu.vector_store %arg7[%c0_16, %c0_17], %5 {strides = array<i32>} : memref<256x256xf32, #tpu.memory_space<vmem>>, vector<256x64xf32>,
    %c0_18 = arith.constant 0 : index
    %c64 = arith.constant 64 : index
    %34 = vector.load %arg7[%c0_18, %c64] : memref<256x256xf32, #tpu.memory_space<vmem>>, vector<256x64xf32>
    tpu.vector_store %arg7[%c0_18, %c64], %6 {strides = array<i32>} : memref<256x256xf32, #tpu.memory_space<vmem>>, vector<256x64xf32>,
    %c0_19 = arith.constant 0 : index
    %c128 = arith.constant 128 : index
    %35 = vector.load %arg7[%c0_19, %c128] : memref<256x256xf32, #tpu.memory_space<vmem>>, vector<256x16xf32>
    tpu.vector_store %arg7[%c0_19, %c128], %11 {strides = array<i32>} : memref<256x256xf32, #tpu.memory_space<vmem>>, vector<256x16xf32>,
    %c0_20 = arith.constant 0 : index
    %c144 = arith.constant 144 : index
    %36 = vector.load %arg7[%c0_20, %c144] : memref<256x256xf32, #tpu.memory_space<vmem>>, vector<256x16xf32>
    tpu.vector_store %arg7[%c0_20, %c144], %21 {strides = array<i32>} : memref<256x256xf32, #tpu.memory_space<vmem>>, vector<256x16xf32>,
    %c0_21 = arith.constant 0 : index
    %c160 = arith.constant 160 : index
    %37 = vector.load %arg7[%c0_21, %c160] : memref<256x256xf32, #tpu.memory_space<vmem>>, vector<256x1xf32>
    tpu.vector_store %arg7[%c0_21, %c160], %32 {strides = array<i32>} : memref<256x256xf32, #tpu.memory_space<vmem>>, vector<256x1xf32>,
    return
  }
  func.func @transform_0(%arg0: i32) -> (i32, i32) {
    %c0_i32 = arith.constant 0 : i32
    %c0_i32_0 = arith.constant 0 : i32
    return %arg0, %c0_i32 : i32, i32
  }
  func.func @transform_1(%arg0: i32) -> (i32, i32) {
    %c0_i32 = arith.constant 0 : i32
    %c0_i32_0 = arith.constant 0 : i32
    %c0_i32_1 = arith.constant 0 : i32
    return %c0_i32, %c0_i32_0 : i32, i32
  }
  func.func @transform_2(%arg0: i32) -> (i32, i32) {
    %c0_i32 = arith.constant 0 : i32
    %c0_i32_0 = arith.constant 0 : i32
    %c0_i32_1 = arith.constant 0 : i32
    return %c0_i32, %c0_i32_0 : i32, i32
  }
  func.func @transform_3(%arg0: i32) -> (i32, i32) {
    %c0_i32 = arith.constant 0 : i32
    %c0_i32_0 = arith.constant 0 : i32
    %c0_i32_1 = arith.constant 0 : i32
    return %c0_i32, %c0_i32_0 : i32, i32
  }
  func.func @transform_4(%arg0: i32) -> (i32, i32) {
    %c0_i32 = arith.constant 0 : i32
    %c0_i32_0 = arith.constant 0 : i32
    %c0_i32_1 = arith.constant 0 : i32
    return %c0_i32, %c0_i32_0 : i32, i32
  }
  func.func @transform_5(%arg0: i32) -> (i32, i32) {
    %c0_i32 = arith.constant 0 : i32
    %c0_i32_0 = arith.constant 0 : i32
    return %arg0, %c0_i32 : i32, i32
  }
  func.func @transform_6(%arg0: i32) -> (i32, i32) {
    %c0_i32 = arith.constant 0 : i32
    %c0_i32_0 = arith.constant 0 : i32
    return %arg0, %c0_i32 : i32, i32
  }
}

</mosaic_0001>

<llo_original>
// kernel: tpu_custom_call.1
$region0: #{tpu_custom_call.1}
  #allocation0 [shape = 'u32[]', space=smem, size = 0x4, offset = 0x4, fixed_abs, tag = 'smem constant byte address 0x4 - core index']
  #allocation1 [shape = 'u32[144,128]{1,0:T(1,128)}', space=vmem, size = 0x12000, scoped, tag = 'internal scratch']
  %s0 = inlined_call_operand.vmem [shape: f32[512,32], index: 0, kind: input, shape index: {}]
  %s1 = inlined_call_operand.vmem [shape: f32[32,64], index: 1, kind: input, shape index: {}]
  %s2 = inlined_call_operand.vmem [shape: f32[1,64], index: 2, kind: input, shape index: {}]
  %s3 = inlined_call_operand.vmem [shape: f32[64,16], index: 3, kind: input, shape index: {}]
  %s4 = inlined_call_operand.vmem [shape: f32[1,16], index: 4, kind: input, shape index: {}]
  %s5 = inlined_call_operand.vmem [shape: s32[512,1], index: 5, kind: input, shape index: {}]
  %s6 = inlined_call_operand.hbm [shape: f32[512,256], index: 6, kind: output, shape index: {}]
  %s7 = sld [smem:[#allocation0]]
  $region57: #{tpu_custom_call.1} parent=0
    _
  %s9 = ssub.s32 1, %s7
  %s10 = scalar_select 0, %s9, %s7
  $region1: #{tpu_custom_call.1} parent=0
    #allocation2 [shape = 'u8[524288]{0}', space=vmem, size = 0x80000, scoped, tag = 'output window, operand 0']
    #allocation3 [shape = 's32[2]{0}', space=sflag, size = 0x8, scoped, tag = 'scoped memory for tpu_custom_call.1']
    %11 = vsyncpa [#allocation3], 0
    %s12 = scalar_lea.sflag [#allocation3], 1
    %13 = vsyncpa %s12, 0
    loop: start=0, step=1, limit=4
    $region2: #{tpu_custom_call.1} parent=1 // loop_pre_header
      _
    $region3: #{tpu_custom_call.1} parent=1 // loop_header
      %s15 = sphi 0, %s19
      %p16 = scmp.ge.s32.totalorder %s15, 4
      %s25 = sphi 0, %s27
      %s28 = sphi 0, %s25
      %s29 = sphi 0, %s28
      %s45 = sphi 0, %s29
      %s49 = sphi 0, %s49
      %s51 = sphi 0, %s49
      %s52 = sphi 0, %s51
      %s66 = sphi 0, %s52
      %s70 = sphi 0, %s70
      %s72 = sphi 0, %s70
      %s73 = sphi 0, %s72
      %s87 = sphi 0, %s73
      %s91 = sphi 0, %s91
      %s93 = sphi 0, %s91
      %s94 = sphi 0, %s93
      %s108 = sphi 0, %s94
      %s112 = sphi 0, %s112
      %s114 = sphi 0, %s112
      %s115 = sphi 0, %s114
      %s129 = sphi 0, %s115
      %s135 = sphi 0, %s137
      %s138 = sphi 0, %s135
      %s139 = sphi 0, %s138
      %s155 = sphi 0, %s139
      %s161 = sphi 0, %s163
      %s164 = sphi 0, %s161
      %s165 = sphi 0, %s164
      %s181 = sphi 0, %s165
    $region4: #{tpu_custom_call.1} parent=1 // loop_header_branch
      %18 = sbr.rel (%p16) target = $region8
    $region5: #{tpu_custom_call.1} parent=1 // loop_body
      %s20 = ssub.s32 %s15, 1
      %s21 = ssub.s32 %s15, 2
      %s22 = sadd.s32 %s15, 1
      %s23 = ssub.s32 %s15, %s22
      %p24 = scmp.eq.s32.totalorder %s23, 0
      %s26 = sadd.s32 %s25, 1
      %s27 = scalar_select %p24, %s25, %s26
      %p30 = pneg %p24
      %p31 = scmp.eq.s32.totalorder %s15, 1
      %p32 = por %p30, %p31
      %p33 = scmp.ne.s32.totalorder %s25, %s28
      %p34 = scmp.eq.s32.totalorder %s15, 0
      %p35 = por %p33, %p34
      %p36 = scmp.ne.s32.totalorder %s25, %s28
      %p37 = scmp.eq.s32.totalorder %s20, 1
      %p38 = por %p36, %p37
      %p39 = scmp.ne.s32.totalorder %s28, %s29
      %p40 = scmp.eq.s32.totalorder %s20, 0
      %p41 = por %p39, %p40
      %p42 = scmp.ne.s32.totalorder %s28, %s29
      %p43 = scmp.eq.s32.totalorder %s21, 1
      %p44 = por %p42, %p43
      %p46 = scmp.ne.s32.totalorder %s29, %s45
      %p47 = scmp.eq.s32.totalorder %s21, 0
      %p48 = por %p46, %p47
      %s50 = sadd.s32 %s49, 1
      %p53 = scmp.eq.s32.totalorder %s15, 1
      %p54 = scmp.ne.s32.totalorder %s49, %s51
      %p55 = scmp.eq.s32.totalorder %s15, 0
      %p56 = por %p54, %p55
      %p57 = scmp.ne.s32.totalorder %s49, %s51
      %p58 = scmp.eq.s32.totalorder %s20, 1
      %p59 = por %p57, %p58
      %p60 = scmp.ne.s32.totalorder %s51, %s52
      %p61 = scmp.eq.s32.totalorder %s20, 0
      %p62 = por %p60, %p61
      %p63 = scmp.ne.s32.totalorder %s51, %s52
      %p64 = scmp.eq.s32.totalorder %s21, 1
      %p65 = por %p63, %p64
      %p67 = scmp.ne.s32.totalorder %s52, %s66
      %p68 = scmp.eq.s32.totalorder %s21, 0
      %p69 = por %p67, %p68
      %s71 = sadd.s32 %s70, 1
      %p74 = scmp.eq.s32.totalorder %s15, 1
      %p75 = scmp.ne.s32.totalorder %s70, %s72
      %p76 = scmp.eq.s32.totalorder %s15, 0
      %p77 = por %p75, %p76
      %p78 = scmp.ne.s32.totalorder %s70, %s72
      %p79 = scmp.eq.s32.totalorder %s20, 1
      %p80 = por %p78, %p79
      %p81 = scmp.ne.s32.totalorder %s72, %s73
      %p82 = scmp.eq.s32.totalorder %s20, 0
      %p83 = por %p81, %p82
      %p84 = scmp.ne.s32.totalorder %s72, %s73
      %p85 = scmp.eq.s32.totalorder %s21, 1
      %p86 = por %p84, %p85
      %p88 = scmp.ne.s32.totalorder %s73, %s87
      %p89 = scmp.eq.s32.totalorder %s21, 0
      %p90 = por %p88, %p89
      %s92 = sadd.s32 %s91, 1
      %p95 = scmp.eq.s32.totalorder %s15, 1
      %p96 = scmp.ne.s32.totalorder %s91, %s93
      %p97 = scmp.eq.s32.totalorder %s15, 0
      %p98 = por %p96, %p97
      %p99 = scmp.ne.s32.totalorder %s91, %s93
      %p100 = scmp.eq.s32.totalorder %s20, 1
      %p101 = por %p99, %p100
      %p102 = scmp.ne.s32.totalorder %s93, %s94
      %p103 = scmp.eq.s32.totalorder %s20, 0
      %p104 = por %p102, %p103
      %p105 = scmp.ne.s32.totalorder %s93, %s94
      %p106 = scmp.eq.s32.totalorder %s21, 1
      %p107 = por %p105, %p106
      %p109 = scmp.ne.s32.totalorder %s94, %s108
      %p110 = scmp.eq.s32.totalorder %s21, 0
      %p111 = por %p109, %p110
      %s113 = sadd.s32 %s112, 1
      %p116 = scmp.eq.s32.totalorder %s15, 1
      %p117 = scmp.ne.s32.totalorder %s112, %s114
      %p118 = scmp.eq.s32.totalorder %s15, 0
      %p119 = por %p117, %p118
      %p120 = scmp.ne.s32.totalorder %s112, %s114
      %p121 = scmp.eq.s32.totalorder %s20, 1
      %p122 = por %p120, %p121
      %p123 = scmp.ne.s32.totalorder %s114, %s115
      %p124 = scmp.eq.s32.totalorder %s20, 0
      %p125 = por %p123, %p124
      %p126 = scmp.ne.s32.totalorder %s114, %s115
      %p127 = scmp.eq.s32.totalorder %s21, 1
      %p128 = por %p126, %p127
      %p130 = scmp.ne.s32.totalorder %s115, %s129
      %p131 = scmp.eq.s32.totalorder %s21, 0
      %p132 = por %p130, %p131
      %s133 = ssub.s32 %s15, %s22
      %p134 = scmp.eq.s32.totalorder %s133, 0
      %s136 = sadd.s32 %s135, 1
      %s137 = scalar_select %p134, %s135, %s136
      %p140 = pneg %p134
      %p141 = scmp.eq.s32.totalorder %s15, 1
      %p142 = por %p140, %p141
      %p143 = scmp.ne.s32.totalorder %s135, %s138
      %p144 = scmp.eq.s32.totalorder %s15, 0
      %p145 = por %p143, %p144
      %p146 = scmp.ne.s32.totalorder %s135, %s138
      %p147 = scmp.eq.s32.totalorder %s20, 1
      %p148 = por %p146, %p147
      %p149 = scmp.ne.s32.totalorder %s138, %s139
      %p150 = scmp.eq.s32.totalorder %s20, 0
      %p151 = por %p149, %p150
      %p152 = scmp.ne.s32.totalorder %s138, %s139
      %p153 = scmp.eq.s32.totalorder %s21, 1
      %p154 = por %p152, %p153
      %p156 = scmp.ne.s32.totalorder %s139, %s155
      %p157 = scmp.eq.s32.totalorder %s21, 0
      %p158 = por %p156, %p157
      %s159 = ssub.s32 %s15, %s22
      %p160 = scmp.eq.s32.totalorder %s159, 0
      %s162 = sadd.s32 %s161, 1
      %s163 = scalar_select %p160, %s161, %s162
      %p166 = pneg %p160
      %p167 = scmp.eq.s32.totalorder %s15, 1
      %p168 = por %p166, %p167
      %p169 = scmp.ne.s32.totalorder %s161, %s164
      %p170 = scmp.eq.s32.totalorder %s15, 0
      %p171 = por %p169, %p170
      %p172 = scmp.ne.s32.totalorder %s161, %s164
      %p173 = scmp.eq.s32.totalorder %s20, 1
      %p174 = por %p172, %p173
      %p175 = scmp.ne.s32.totalorder %s164, %s165
      %p176 = scmp.eq.s32.totalorder %s20, 0
      %p177 = por %p175, %p176
      %p178 = scmp.ne.s32.totalorder %s164, %s165
      %p179 = scmp.eq.s32.totalorder %s21, 1
      %p180 = por %p178, %p179
      %p182 = scmp.ne.s32.totalorder %s165, %s181
      %p183 = scmp.eq.s32.totalorder %s21, 0
      %p184 = por %p182, %p183
      %p185 = scmp.le.s32.totalorder 1, %s15
      %p186 = scmp.lt.s32.totalorder %s15, 3
      %p187 = pnand %p185, %p186
      %p188 = pneg %p187
      // Predicated region
      $region9: #{tpu_custom_call.1} parent=5 // pred_check
        _
      $region10: #{tpu_custom_call.1} parent=5 // pred_check_branch
        %190 = sbr.rel (%p187) target = $region12
      $region11: #{tpu_custom_call.1} parent=5 // pred_region
        %s191 = ssub.s32 %s15, 1
        // Predicated region
        $region13: #{tpu_custom_call.1} parent=11 // pred_check
          %p192 = pneg %p62
        $region14: #{tpu_custom_call.1} parent=11 // pred_check_branch
          %194 = sbr.rel (%p192) target = $region16
        $region15: #{tpu_custom_call.1} parent=11 // pred_region
          _
        $region16: #{tpu_custom_call.1} parent=11 // pred_fallthru
          _
        // Predicated region
        $region17: #{tpu_custom_call.1} parent=11 // pred_check
          %p195 = pneg %p83
        $region18: #{tpu_custom_call.1} parent=11 // pred_check_branch
          %197 = sbr.rel (%p195) target = $region20
        $region19: #{tpu_custom_call.1} parent=11 // pred_region
          _
        $region20: #{tpu_custom_call.1} parent=11 // pred_fallthru
          _
        // Predicated region
        $region21: #{tpu_custom_call.1} parent=11 // pred_check
          %p198 = pneg %p104
        $region22: #{tpu_custom_call.1} parent=11 // pred_check_branch
          %200 = sbr.rel (%p198) target = $region24
        $region23: #{tpu_custom_call.1} parent=11 // pred_region
          _
        $region24: #{tpu_custom_call.1} parent=11 // pred_fallthru
          _
        // Predicated region
        $region25: #{tpu_custom_call.1} parent=11 // pred_check
          %p201 = pneg %p125
        $region26: #{tpu_custom_call.1} parent=11 // pred_check_branch
          %203 = sbr.rel (%p201) target = $region28
        $region27: #{tpu_custom_call.1} parent=11 // pred_region
          _
        $region28: #{tpu_custom_call.1} parent=11 // pred_fallthru
          _
      $region12: #{tpu_custom_call.1} parent=5 // pred_fallthru
        _
      %p204 = scmp.lt.s32.totalorder %s15, 2
      // Predicated region
      $region29: #{tpu_custom_call.1} parent=5 // pred_check
        %p205 = pneg %p204
      $region30: #{tpu_custom_call.1} parent=5 // pred_check_branch
        %207 = sbr.rel (%p205) target = $region32
      $region31: #{tpu_custom_call.1} parent=5 // pred_region
        // Predicated region
        $region33: #{tpu_custom_call.1} parent=31 // pred_check
          %p208 = pneg %p35
        $region34: #{tpu_custom_call.1} parent=31 // pred_check_branch
          %210 = sbr.rel (%p208) target = $region36
        $region35: #{tpu_custom_call.1} parent=31 // pred_region
          %s211 = smul.u32 32, %s15
          %p212 = scmp.lt.s32.totalorder %s211, 63
          %s213 = scalar_select %p212, %s211, 63
          %s214 = smul.addr %s213, 8
          %s215 = scalar_lea.vmem %s0, %s214
          %s216 = smul.u32 32, %s15
        $region36: #{tpu_custom_call.1} parent=31 // pred_fallthru
          _
        // Predicated region
        $region37: #{tpu_custom_call.1} parent=31 // pred_check
          %p217 = pneg %p145
        $region38: #{tpu_custom_call.1} parent=31 // pred_check_branch
          %219 = sbr.rel (%p217) target = $region40
        $region39: #{tpu_custom_call.1} parent=31 // pred_region
          %s220 = smul.u32 32, %s15
          %p221 = scmp.lt.s32.totalorder %s220, 63
          %s222 = scalar_select %p221, %s220, 63
          %s223 = smul.addr %s222, 8
          %s224 = scalar_lea.vmem %s5, %s223
          %s225 = smul.u32 32, %s15
        $region40: #{tpu_custom_call.1} parent=31 // pred_fallthru
          _
      $region32: #{tpu_custom_call.1} parent=5 // pred_fallthru
        _
      %p226 = scmp.le.s32.totalorder 1, %s15
      %p227 = scmp.lt.s32.totalorder %s15, 3
      %p228 = pnand %p226, %p227
      %p229 = pneg %p228
      // Predicated region
      $region41: #{tpu_custom_call.1} parent=5 // pred_check
        _
      $region42: #{tpu_custom_call.1} parent=5 // pred_check_branch
        %231 = sbr.rel (%p228) target = $region44
      $region43: #{tpu_custom_call.1} parent=5 // pred_region
        %s232 = ssub.s32 %s15, 1
        %s233 = smul.u32 32, %s20
        %p234 = scmp.lt.s32.totalorder %s233, 63
        %s235 = scalar_select %p234, %s233, 63
        %s236 = smul.addr %s235, 8
        %s237 = scalar_lea.vmem %s0, %s236
        %p238 = pneg %p41
        %p239 = pneg %p38
        %p240 = pneg %p62
        %p241 = pneg %p59
        %p242 = pneg %p83
        %p243 = pneg %p80
        %p244 = pneg %p104
        %p245 = pneg %p101
        %p246 = pneg %p125
        %p247 = pneg %p122
        %s248 = smul.u32 32, %s20
        %p249 = scmp.lt.s32.totalorder %s248, 63
        %s250 = scalar_select %p249, %s248, 63
        %s251 = smul.addr %s250, 8
        %s252 = scalar_lea.vmem %s5, %s251
        %p253 = pneg %p151
        %p254 = pneg %p148
        %p255 = pneg %p177
        %p256 = pneg %p174
        %s257 = sand.u32 %s164, 1
        %s258 = scalar_lea.sflag [#allocation3], %s257
        %s259 = sand.u32 %s164, 1
        %s260 = smul.addr %s259, 512
        %s261 = scalar_lea.vmem [#allocation2], %s260
        %s262 = smul.u32 32, %s20
        %p263 = scmp.lt.s32.totalorder %s262, 63
        %s264 = scalar_select %p263, %s262, 63
        %s265 = smul.addr %s264, 8
        %s266 = scalar_lea.vmem %s0, %s265
        %s267 = smul.u32 32, %s20
        %s268 = smul.u32 32, %s20
        %p269 = scmp.lt.s32.totalorder %s268, 63
        %s270 = scalar_select %p269, %s268, 63
        %s271 = smul.addr %s270, 8
        %s272 = scalar_lea.vmem %s5, %s271
        %s273 = smul.u32 32, %s20
        %s274 = smul.u32 32, %s20
        %v275 = vld [vmem:[%s266] sm:$0xff]
        %v276 = vld [vmem:[%s266 + $0x8] sm:$0xff]
        %v277 = vld [vmem:[%s266 + $0x10] sm:$0xff]
        %v278 = vld [vmem:[%s266 + $0x18] sm:$0xff]
        %v279 = vld [vmem:[%s266 + $0x20] sm:$0xff]
        %v280 = vld [vmem:[%s266 + $0x28] sm:$0xff]
        %v281 = vld [vmem:[%s266 + $0x30] sm:$0xff]
        %v282 = vld [vmem:[%s266 + $0x38] sm:$0xff]
        %v283 = vld [vmem:[%s266 + $0x40] sm:$0xff]
        %v284 = vld [vmem:[%s266 + $0x48] sm:$0xff]
        %v285 = vld [vmem:[%s266 + $0x50] sm:$0xff]
        %v286 = vld [vmem:[%s266 + $0x58] sm:$0xff]
        %v287 = vld [vmem:[%s266 + $0x60] sm:$0xff]
        %v288 = vld [vmem:[%s266 + $0x68] sm:$0xff]
        %v289 = vld [vmem:[%s266 + $0x70] sm:$0xff]
        %v290 = vld [vmem:[%s266 + $0x78] sm:$0xff]
        %v291 = vld [vmem:[%s266 + $0x80] sm:$0xff]
        %v292 = vld [vmem:[%s266 + $0x88] sm:$0xff]
        %v293 = vld [vmem:[%s266 + $0x90] sm:$0xff]
        %v294 = vld [vmem:[%s266 + $0x98] sm:$0xff]
        %v295 = vld [vmem:[%s266 + $0xa0] sm:$0xff]
        %v296 = vld [vmem:[%s266 + $0xa8] sm:$0xff]
        %v297 = vld [vmem:[%s266 + $0xb0] sm:$0xff]
        %v298 = vld [vmem:[%s266 + $0xb8] sm:$0xff]
        %v299 = vld [vmem:[%s266 + $0xc0] sm:$0xff]
        %v300 = vld [vmem:[%s266 + $0xc8] sm:$0xff]
        %v301 = vld [vmem:[%s266 + $0xd0] sm:$0xff]
        %v302 = vld [vmem:[%s266 + $0xd8] sm:$0xff]
        %v303 = vld [vmem:[%s266 + $0xe0] sm:$0xff]
        %v304 = vld [vmem:[%s266 + $0xe8] sm:$0xff]
        %v305 = vld [vmem:[%s266 + $0xf0] sm:$0xff]
        %v306 = vld [vmem:[%s266 + $0xf8] sm:$0xff]
        %v307 = vld [vmem:[%s1] sm:$0xff]
        %v308 = vld [vmem:[%s1 + $0x8] sm:$0xff]
        %v309 = vld [vmem:[%s1 + $0x10] sm:$0xff]
        %v310 = vld [vmem:[%s1 + $0x18] sm:$0xff]
        %v311 = vld [vmem:[%s2] sm:$0x1]
        %v313 = vlaneseq
        %v314 = vshrl.u32 %v313, 7
        %v315 = vsub.s32 0, %v314
        %v316 = vrot.slane %v311, %v315
        %vm318 = vcmask 261120
        %v320 = vsel %vm318, %v275, 0
        %v323 = vsel %vm318, %v276, 0
        %v326 = vsel %vm318, %v277, 0
        %v329 = vsel %vm318, %v278, 0
        %v332 = vsel %vm318, %v279, 0
        %v335 = vsel %vm318, %v280, 0
        %v338 = vsel %vm318, %v281, 0
        %v341 = vsel %vm318, %v282, 0
        %v344 = vsel %vm318, %v283, 0
        %v347 = vsel %vm318, %v284, 0
        %v350 = vsel %vm318, %v285, 0
        %v353 = vsel %vm318, %v286, 0
        %v356 = vsel %vm318, %v287, 0
        %v359 = vsel %vm318, %v288, 0
        %v362 = vsel %vm318, %v289, 0
        %v365 = vsel %vm318, %v290, 0
        %v368 = vsel %vm318, %v291, 0
        %v371 = vsel %vm318, %v292, 0
        %v374 = vsel %vm318, %v293, 0
        %v377 = vsel %vm318, %v294, 0
        %v380 = vsel %vm318, %v295, 0
        %v383 = vsel %vm318, %v296, 0
        %v386 = vsel %vm318, %v297, 0
        %v389 = vsel %vm318, %v298, 0
        %v392 = vsel %vm318, %v299, 0
        %v395 = vsel %vm318, %v300, 0
        %v398 = vsel %vm318, %v301, 0
        %v401 = vsel %vm318, %v302, 0
        %v404 = vsel %vm318, %v303, 0
        %v407 = vsel %vm318, %v304, 0
        %v410 = vsel %vm318, %v305, 0
        %v413 = vsel %vm318, %v306, 0
        %415 = vmatprep.subr.mxu0 0.0
        %416 = vmatpush1.msra.mxu0 %v307
        %417 = vmatprep.subr.mxu0 0.0
        %418 = vmatpush1.msra.mxu0 %v308
        %419 = vmatprep.subr.mxu0 0.0
        %420 = vmatpush1.msra.mxu0 %v309
        %421 = vmatprep.subr.mxu0 0.0
        %422 = vmatpush1.msra.mxu0 %v310
        %423 = vmatprep.subr.mxu0 0.0
        %424 = vmatpush1.msra.mxu0 0.0
        %425 = vmatprep.subr.mxu0 0.0
        %426 = vmatpush1.msra.mxu0 0.0
        %427 = vmatprep.subr.mxu0 0.0
        %428 = vmatpush1.msra.mxu0 0.0
        %429 = vmatprep.subr.mxu0 0.0
        %430 = vmatpush1.msra.mxu0 0.0
        %431 = vmatprep.subr.mxu0 0.0
        %432 = vmatpush1.msra.mxu0 0.0
        %433 = vmatprep.subr.mxu0 0.0
        %434 = vmatpush1.msra.mxu0 0.0
        %435 = vmatprep.subr.mxu0 0.0
        %436 = vmatpush1.msra.mxu0 0.0
        %437 = vmatprep.subr.mxu0 0.0
        %438 = vmatpush1.msra.mxu0 0.0
        %439 = vmatprep.subr.mxu0 0.0
        %440 = vmatpush1.msra.mxu0 0.0
        %441 = vmatprep.subr.mxu0 0.0
        %442 = vmatpush1.msra.mxu0 0.0
        %443 = vmatprep.subr.mxu0 0.0
        %444 = vmatpush1.msra.mxu0 0.0
        %445 = vmatprep.subr.mxu0 0.0
        %446 = vmatpush1.msra.mxu0 0.0
        %447 = vmatprep.subr.mxu0 0.0
        %448 = vmatpush1.msra.mxu0 0.0
        %449 = vmatprep.subr.mxu0 0.0
        %450 = vmatpush1.msra.mxu0 0.0
        %451 = vmatprep.subr.mxu0 0.0
        %452 = vmatpush1.msra.mxu0 0.0
        %453 = vmatprep.subr.mxu0 0.0
        %454 = vmatpush1.msra.mxu0 0.0
        %455 = vmatprep.subr.mxu0 0.0
        %456 = vmatpush1.msra.mxu0 0.0
        %457 = vmatprep.subr.mxu0 0.0
        %458 = vmatpush1.msra.mxu0 0.0
        %459 = vmatprep.subr.mxu0 0.0
        %460 = vmatpush1.msra.mxu0 0.0
        %461 = vmatprep.subr.mxu0 0.0
        %462 = vmatpush1.msra.mxu0 0.0
        %463 = vmatprep.subr.mxu0 0.0
        %464 = vmatpush1.msra.mxu0 0.0
        %465 = vmatprep.subr.mxu0 0.0
        %466 = vmatpush1.msra.mxu0 0.0
        %467 = vmatprep.subr.mxu0 0.0
        %468 = vmatpush1.msra.mxu0 0.0
        %469 = vmatprep.subr.mxu0 0.0
        %470 = vmatpush1.msra.mxu0 0.0
        %471 = vmatprep.subr.mxu0 0.0
        %472 = vmatpush1.msra.mxu0 0.0
        %473 = vmatprep.subr.mxu0 0.0
        %474 = vmatpush1.msra.mxu0 0.0
        %475 = vmatprep.subr.mxu0 0.0
        %476 = vmatpush1.msra.mxu0 0.0
        %477 = vmatprep.subr.mxu0 0.0
        %478 = vmatpush1.msra.mxu0 0.0
        %479 = vmatprep.mubr.f32.mxu0 0.0
        %480 = vmatmul.mubr.f32.gmra.mrb[0].mxu0 %v320
        %v481 = vpop.f32.mrb[0].mxu0
        %v482 = vadd.f32 %v316, %v481
        %v483 = vpop.f32.mrb[0].mxu0
        %484 = vmatprep.mubr.f32.mxu0 0.0
        %485 = vmatmul.mubr.f32.gmra.mrb[0].mxu0 %v323
        %v486 = vpop.f32.mrb[0].mxu0
        %v487 = vadd.f32 %v316, %v486
        %v488 = vpop.f32.mrb[0].mxu0
        %489 = vmatprep.mubr.f32.mxu0 0.0
        %490 = vmatmul.mubr.f32.gmra.mrb[0].mxu0 %v326
        %v491 = vpop.f32.mrb[0].mxu0
        %v492 = vadd.f32 %v316, %v491
        %v493 = vpop.f32.mrb[0].mxu0
        %494 = vmatprep.mubr.f32.mxu0 0.0
        %495 = vmatmul.mubr.f32.gmra.mrb[0].mxu0 %v329
        %v496 = vpop.f32.mrb[0].mxu0
        %v497 = vadd.f32 %v316, %v496
        %v498 = vpop.f32.mrb[0].mxu0
        %499 = vmatprep.mubr.f32.mxu0 0.0
        %500 = vmatmul.mubr.f32.gmra.mrb[0].mxu0 %v332
        %v501 = vpop.f32.mrb[0].mxu0
        %v502 = vadd.f32 %v316, %v501
        %v503 = vpop.f32.mrb[0].mxu0
        %504 = vmatprep.mubr.f32.mxu0 0.0
        %505 = vmatmul.mubr.f32.gmra.mrb[0].mxu0 %v335
        %v506 = vpop.f32.mrb[0].mxu0
        %v507 = vadd.f32 %v316, %v506
        %v508 = vpop.f32.mrb[0].mxu0
        %509 = vmatprep.mubr.f32.mxu0 0.0
        %510 = vmatmul.mubr.f32.gmra.mrb[0].mxu0 %v338
        %v511 = vpop.f32.mrb[0].mxu0
        %v512 = vadd.f32 %v316, %v511
        %v513 = vpop.f32.mrb[0].mxu0
        %514 = vmatprep.mubr.f32.mxu0 0.0
        %515 = vmatmul.mubr.f32.gmra.mrb[0].mxu0 %v341
        %v516 = vpop.f32.mrb[0].mxu0
        %v517 = vadd.f32 %v316, %v516
        %v518 = vpop.f32.mrb[0].mxu0
        %519 = vmatprep.mubr.f32.mxu0 0.0
        %520 = vmatmul.mubr.f32.gmra.mrb[0].mxu0 %v344
        %v521 = vpop.f32.mrb[0].mxu0
        %v522 = vadd.f32 %v316, %v521
        %v523 = vpop.f32.mrb[0].mxu0
        %524 = vmatprep.mubr.f32.mxu0 0.0
        %525 = vmatmul.mubr.f32.gmra.mrb[0].mxu0 %v347
        %v526 = vpop.f32.mrb[0].mxu0
        %v527 = vadd.f32 %v316, %v526
        %v528 = vpop.f32.mrb[0].mxu0
        %529 = vmatprep.mubr.f32.mxu0 0.0
        %530 = vmatmul.mubr.f32.gmra.mrb[0].mxu0 %v350
        %v531 = vpop.f32.mrb[0].mxu0
        %v532 = vadd.f32 %v316, %v531
        %v533 = vpop.f32.mrb[0].mxu0
        %534 = vmatprep.mubr.f32.mxu0 0.0
        %535 = vmatmul.mubr.f32.gmra.mrb[0].mxu0 %v353
        %v536 = vpop.f32.mrb[0].mxu0
        %v537 = vadd.f32 %v316, %v536
        %v538 = vpop.f32.mrb[0].mxu0
        %539 = vmatprep.mubr.f32.mxu0 0.0
        %540 = vmatmul.mubr.f32.gmra.mrb[0].mxu0 %v356
        %v541 = vpop.f32.mrb[0].mxu0
        %v542 = vadd.f32 %v316, %v541
        %v543 = vpop.f32.mrb[0].mxu0
        %544 = vmatprep.mubr.f32.mxu0 0.0
        %545 = vmatmul.mubr.f32.gmra.mrb[0].mxu0 %v359
        %v546 = vpop.f32.mrb[0].mxu0
        %v547 = vadd.f32 %v316, %v546
        %v548 = vpop.f32.mrb[0].mxu0
        %549 = vmatprep.mubr.f32.mxu0 0.0
        %550 = vmatmul.mubr.f32.gmra.mrb[0].mxu0 %v362
        %v551 = vpop.f32.mrb[0].mxu0
        %v552 = vadd.f32 %v316, %v551
        %v553 = vpop.f32.mrb[0].mxu0
        %554 = vmatprep.mubr.f32.mxu0 0.0
        %555 = vmatmul.mubr.f32.gmra.mrb[0].mxu0 %v365
        %v556 = vpop.f32.mrb[0].mxu0
        %v557 = vadd.f32 %v316, %v556
        %v558 = vpop.f32.mrb[0].mxu0
        %559 = vmatprep.mubr.f32.mxu0 0.0
        %560 = vmatmul.mubr.f32.gmra.mrb[0].mxu0 %v368
        %v561 = vpop.f32.mrb[0].mxu0
        %v562 = vadd.f32 %v316, %v561
        %v563 = vpop.f32.mrb[0].mxu0
        %564 = vmatprep.mubr.f32.mxu0 0.0
        %565 = vmatmul.mubr.f32.gmra.mrb[0].mxu0 %v371
        %v566 = vpop.f32.mrb[0].mxu0
        %v567 = vadd.f32 %v316, %v566
        %v568 = vpop.f32.mrb[0].mxu0
        %569 = vmatprep.mubr.f32.mxu0 0.0
        %570 = vmatmul.mubr.f32.gmra.mrb[0].mxu0 %v374
        %v571 = vpop.f32.mrb[0].mxu0
        %v572 = vadd.f32 %v316, %v571
        %v573 = vpop.f32.mrb[0].mxu0
        %574 = vmatprep.mubr.f32.mxu0 0.0
        %575 = vmatmul.mubr.f32.gmra.mrb[0].mxu0 %v377
        %v576 = vpop.f32.mrb[0].mxu0
        %v577 = vadd.f32 %v316, %v576
        %v578 = vpop.f32.mrb[0].mxu0
        %579 = vmatprep.mubr.f32.mxu0 0.0
        %580 = vmatmul.mubr.f32.gmra.mrb[0].mxu0 %v380
        %v581 = vpop.f32.mrb[0].mxu0
        %v582 = vadd.f32 %v316, %v581
        %v583 = vpop.f32.mrb[0].mxu0
        %584 = vmatprep.mubr.f32.mxu0 0.0
        %585 = vmatmul.mubr.f32.gmra.mrb[0].mxu0 %v383
        %v586 = vpop.f32.mrb[0].mxu0
        %v587 = vadd.f32 %v316, %v586
        %v588 = vpop.f32.mrb[0].mxu0
        %589 = vmatprep.mubr.f32.mxu0 0.0
        %590 = vmatmul.mubr.f32.gmra.mrb[0].mxu0 %v386
        %v591 = vpop.f32.mrb[0].mxu0
        %v592 = vadd.f32 %v316, %v591
        %v593 = vpop.f32.mrb[0].mxu0
        %594 = vmatprep.mubr.f32.mxu0 0.0
        %595 = vmatmul.mubr.f32.gmra.mrb[0].mxu0 %v389
        %v596 = vpop.f32.mrb[0].mxu0
        %v597 = vadd.f32 %v316, %v596
        %v598 = vpop.f32.mrb[0].mxu0
        %599 = vmatprep.mubr.f32.mxu0 0.0
        %600 = vmatmul.mubr.f32.gmra.mrb[0].mxu0 %v392
        %v601 = vpop.f32.mrb[0].mxu0
        %v602 = vadd.f32 %v316, %v601
        %v603 = vpop.f32.mrb[0].mxu0
        %604 = vmatprep.mubr.f32.mxu0 0.0
        %605 = vmatmul.mubr.f32.gmra.mrb[0].mxu0 %v395
        %v606 = vpop.f32.mrb[0].mxu0
        %v607 = vadd.f32 %v316, %v606
        %v608 = vpop.f32.mrb[0].mxu0
        %609 = vmatprep.mubr.f32.mxu0 0.0
        %610 = vmatmul.mubr.f32.gmra.mrb[0].mxu0 %v398
        %v611 = vpop.f32.mrb[0].mxu0
        %v612 = vadd.f32 %v316, %v611
        %v613 = vpop.f32.mrb[0].mxu0
        %614 = vmatprep.mubr.f32.mxu0 0.0
        %615 = vmatmul.mubr.f32.gmra.mrb[0].mxu0 %v401
        %v616 = vpop.f32.mrb[0].mxu0
        %v617 = vadd.f32 %v316, %v616
        %v618 = vpop.f32.mrb[0].mxu0
        %619 = vmatprep.mubr.f32.mxu0 0.0
        %620 = vmatmul.mubr.f32.gmra.mrb[0].mxu0 %v404
        %v621 = vpop.f32.mrb[0].mxu0
        %v622 = vadd.f32 %v316, %v621
        %v623 = vpop.f32.mrb[0].mxu0
        %624 = vmatprep.mubr.f32.mxu0 0.0
        %625 = vmatmul.mubr.f32.gmra.mrb[0].mxu0 %v407
        %v626 = vpop.f32.mrb[0].mxu0
        %v627 = vadd.f32 %v316, %v626
        %v628 = vpop.f32.mrb[0].mxu0
        %629 = vmatprep.mubr.f32.mxu0 0.0
        %630 = vmatmul.mubr.f32.gmra.mrb[0].mxu0 %v410
        %v631 = vpop.f32.mrb[0].mxu0
        %v632 = vadd.f32 %v316, %v631
        %v633 = vpop.f32.mrb[0].mxu0
        %634 = vmatprep.mubr.f32.mxu0 0.0
        %635 = vmatmul.mubr.f32.gmra.mrb[0].mxu0 %v413
        %v636 = vpop.f32.mrb[0].mxu0
        %v637 = vadd.f32 %v316, %v636
        %v638 = vpop.f32.mrb[0].mxu0
        %639 = vdwg.mxu0
        %v640 = vtanh.pop %v482
        %v641 = vtanh.pop %v487
        %v642 = vtanh.pop %v492
        %v643 = vtanh.pop %v497
        %v644 = vtanh.pop %v502
        %v645 = vtanh.pop %v507
        %v646 = vtanh.pop %v512
        %v647 = vtanh.pop %v517
        %v648 = vtanh.pop %v522
        %v649 = vtanh.pop %v527
        %v650 = vtanh.pop %v532
        %v651 = vtanh.pop %v537
        %v652 = vtanh.pop %v542
        %v653 = vtanh.pop %v547
        %v654 = vtanh.pop %v552
        %v655 = vtanh.pop %v557
        %v656 = vtanh.pop %v562
        %v657 = vtanh.pop %v567
        %v658 = vtanh.pop %v572
        %v659 = vtanh.pop %v577
        %v660 = vtanh.pop %v582
        %v661 = vtanh.pop %v587
        %v662 = vtanh.pop %v592
        %v663 = vtanh.pop %v597
        %v664 = vtanh.pop %v602
        %v665 = vtanh.pop %v607
        %v666 = vtanh.pop %v612
        %v667 = vtanh.pop %v617
        %v668 = vtanh.pop %v622
        %v669 = vtanh.pop %v627
        %v670 = vtanh.pop %v632
        %v671 = vtanh.pop %v637
        %v672 = vld [vmem:[%s3] sm:$0xff]
        %v673 = vld [vmem:[%s3 + $0x8] sm:$0xff]
        %v674 = vld [vmem:[%s3 + $0x10] sm:$0xff]
        %v675 = vld [vmem:[%s3 + $0x18] sm:$0xff]
        %v676 = vld [vmem:[%s3 + $0x20] sm:$0xff]
        %v677 = vld [vmem:[%s3 + $0x28] sm:$0xff]
        %v678 = vld [vmem:[%s3 + $0x30] sm:$0xff]
        %v679 = vld [vmem:[%s3 + $0x38] sm:$0xff]
        %v680 = vld [vmem:[%s4] sm:$0x1]
        %v682 = vlaneseq
        %v683 = vshrl.u32 %v682, 7
        %v684 = vsub.s32 0, %v683
        %v685 = vrot.slane %v680, %v684
        %vm687 = vcmask 523264
        %v689 = vsel %vm687, %v640, 0
        %v692 = vsel %vm687, %v641, 0
        %v695 = vsel %vm687, %v642, 0
        %v698 = vsel %vm687, %v643, 0
        %v701 = vsel %vm687, %v644, 0
        %v704 = vsel %vm687, %v645, 0
        %v707 = vsel %vm687, %v646, 0
        %v710 = vsel %vm687, %v647, 0
        %v713 = vsel %vm687, %v648, 0
        %v716 = vsel %vm687, %v649, 0
        %v719 = vsel %vm687, %v650, 0
        %v722 = vsel %vm687, %v651, 0
        %v725 = vsel %vm687, %v652, 0
        %v728 = vsel %vm687, %v653, 0
        %v731 = vsel %vm687, %v654, 0
        %v734 = vsel %vm687, %v655, 0
        %v737 = vsel %vm687, %v656, 0
        %v740 = vsel %vm687, %v657, 0
        %v743 = vsel %vm687, %v658, 0
        %v746 = vsel %vm687, %v659, 0
        %v749 = vsel %vm687, %v660, 0
        %v752 = vsel %vm687, %v661, 0
        %v755 = vsel %vm687, %v662, 0
        %v758 = vsel %vm687, %v663, 0
        %v761 = vsel %vm687, %v664, 0
        %v764 = vsel %vm687, %v665, 0
        %v767 = vsel %vm687, %v666, 0
        %v770 = vsel %vm687, %v667, 0
        %v773 = vsel %vm687, %v668, 0
        %v776 = vsel %vm687, %v669, 0
        %v779 = vsel %vm687, %v670, 0
        %v782 = vsel %vm687, %v671, 0
        %784 = vmatprep.subr.mxu0 0.0
        %785 = vmatpush1.msra.mxu0 %v672
        %786 = vmatprep.subr.mxu0 0.0
        %787 = vmatpush1.msra.mxu0 %v673
        %788 = vmatprep.subr.mxu0 0.0
        %789 = vmatpush1.msra.mxu0 %v674
        %790 = vmatprep.subr.mxu0 0.0
        %791 = vmatpush1.msra.mxu0 %v675
        %792 = vmatprep.subr.mxu0 0.0
        %793 = vmatpush1.msra.mxu0 %v676
        %794 = vmatprep.subr.mxu0 0.0
        %795 = vmatpush1.msra.mxu0 %v677
        %796 = vmatprep.subr.mxu0 0.0
        %797 = vmatpush1.msra.mxu0 %v678
        %798 = vmatprep.subr.mxu0 0.0
        %799 = vmatpush1.msra.mxu0 %v679
        %800 = vmatprep.subr.mxu0 0.0
        %801 = vmatpush1.msra.mxu0 0.0
        %802 = vmatprep.subr.mxu0 0.0
        %803 = vmatpush1.msra.mxu0 0.0
        %804 = vmatprep.subr.mxu0 0.0
        %805 = vmatpush1.msra.mxu0 0.0
        %806 = vmatprep.subr.mxu0 0.0
        %807 = vmatpush1.msra.mxu0 0.0
        %808 = vmatprep.subr.mxu0 0.0
        %809 = vmatpush1.msra.mxu0 0.0
        %810 = vmatprep.subr.mxu0 0.0
        %811 = vmatpush1.msra.mxu0 0.0
        %812 = vmatprep.subr.mxu0 0.0
        %813 = vmatpush1.msra.mxu0 0.0
        %814 = vmatprep.subr.mxu0 0.0
        %815 = vmatpush1.msra.mxu0 0.0
        %816 = vmatprep.subr.mxu0 0.0
        %817 = vmatpush1.msra.mxu0 0.0
        %818 = vmatprep.subr.mxu0 0.0
        %819 = vmatpush1.msra.mxu0 0.0
        %820 = vmatprep.subr.mxu0 0.0
        %821 = vmatpush1.msra.mxu0 0.0
        %822 = vmatprep.subr.mxu0 0.0
        %823 = vmatpush1.msra.mxu0 0.0
        %824 = vmatprep.subr.mxu0 0.0
        %825 = vmatpush1.msra.mxu0 0.0
        %826 = vmatprep.subr.mxu0 0.0
        %827 = vmatpush1.msra.mxu0 0.0
        %828 = vmatprep.subr.mxu0 0.0
        %829 = vmatpush1.msra.mxu0 0.0
        %830 = vmatprep.subr.mxu0 0.0
        %831 = vmatpush1.msra.mxu0 0.0
        %832 = vmatprep.subr.mxu0 0.0
        %833 = vmatpush1.msra.mxu0 0.0
        %834 = vmatprep.subr.mxu0 0.0
        %835 = vmatpush1.msra.mxu0 0.0
        %836 = vmatprep.subr.mxu0 0.0
        %837 = vmatpush1.msra.mxu0 0.0
        %838 = vmatprep.subr.mxu0 0.0
        %839 = vmatpush1.msra.mxu0 0.0
        %840 = vmatprep.subr.mxu0 0.0
        %841 = vmatpush1.msra.mxu0 0.0
        %842 = vmatprep.subr.mxu0 0.0
        %843 = vmatpush1.msra.mxu0 0.0
        %844 = vmatprep.subr.mxu0 0.0
        %845 = vmatpush1.msra.mxu0 0.0
        %846 = vmatprep.subr.mxu0 0.0
        %847 = vmatpush1.msra.mxu0 0.0
        %848 = vmatprep.mubr.f32.mxu0 0.0
        %849 = vmatmul.mubr.f32.gmra.mrb[0].mxu0 %v689
        %v850 = vpop.f32.mrb[0].mxu0
        %v851 = vadd.f32 %v685, %v850
        %v852 = vpop.f32.mrb[0].mxu0
        %853 = vmatprep.mubr.f32.mxu0 0.0
        %854 = vmatmul.mubr.f32.gmra.mrb[0].mxu0 %v692
        %v855 = vpop.f32.mrb[0].mxu0
        %v856 = vadd.f32 %v685, %v855
        %v857 = vpop.f32.mrb[0].mxu0
        %858 = vmatprep.mubr.f32.mxu0 0.0
        %859 = vmatmul.mubr.f32.gmra.mrb[0].mxu0 %v695
        %v860 = vpop.f32.mrb[0].mxu0
        %v861 = vadd.f32 %v685, %v860
        %v862 = vpop.f32.mrb[0].mxu0
        %863 = vmatprep.mubr.f32.mxu0 0.0
        %864 = vmatmul.mubr.f32.gmra.mrb[0].mxu0 %v698
        %v865 = vpop.f32.mrb[0].mxu0
        %v866 = vadd.f32 %v685, %v865
        %v867 = vpop.f32.mrb[0].mxu0
        %868 = vmatprep.mubr.f32.mxu0 0.0
        %869 = vmatmul.mubr.f32.gmra.mrb[0].mxu0 %v701
        %v870 = vpop.f32.mrb[0].mxu0
        %v871 = vadd.f32 %v685, %v870
        %v872 = vpop.f32.mrb[0].mxu0
        %873 = vmatprep.mubr.f32.mxu0 0.0
        %874 = vmatmul.mubr.f32.gmra.mrb[0].mxu0 %v704
        %v875 = vpop.f32.mrb[0].mxu0
        %v876 = vadd.f32 %v685, %v875
        %v877 = vpop.f32.mrb[0].mxu0
        %878 = vmatprep.mubr.f32.mxu0 0.0
        %879 = vmatmul.mubr.f32.gmra.mrb[0].mxu0 %v707
        %v880 = vpop.f32.mrb[0].mxu0
        %v881 = vadd.f32 %v685, %v880
        %v882 = vpop.f32.mrb[0].mxu0
        %883 = vmatprep.mubr.f32.mxu0 0.0
        %884 = vmatmul.mubr.f32.gmra.mrb[0].mxu0 %v710
        %v885 = vpop.f32.mrb[0].mxu0
        %v886 = vadd.f32 %v685, %v885
        %v887 = vpop.f32.mrb[0].mxu0
        %888 = vmatprep.mubr.f32.mxu0 0.0
        %889 = vmatmul.mubr.f32.gmra.mrb[0].mxu0 %v713
        %v890 = vpop.f32.mrb[0].mxu0
        %v891 = vadd.f32 %v685, %v890
        %v892 = vpop.f32.mrb[0].mxu0
        %893 = vmatprep.mubr.f32.mxu0 0.0
        %894 = vmatmul.mubr.f32.gmra.mrb[0].mxu0 %v716
        %v895 = vpop.f32.mrb[0].mxu0
        %v896 = vadd.f32 %v685, %v895
        %v897 = vpop.f32.mrb[0].mxu0
        %898 = vmatprep.mubr.f32.mxu0 0.0
        %899 = vmatmul.mubr.f32.gmra.mrb[0].mxu0 %v719
        %v900 = vpop.f32.mrb[0].mxu0
        %v901 = vadd.f32 %v685, %v900
        %v902 = vpop.f32.mrb[0].mxu0
        %903 = vmatprep.mubr.f32.mxu0 0.0
        %904 = vmatmul.mubr.f32.gmra.mrb[0].mxu0 %v722
        %v905 = vpop.f32.mrb[0].mxu0
        %v906 = vadd.f32 %v685, %v905
        %v907 = vpop.f32.mrb[0].mxu0
        %908 = vmatprep.mubr.f32.mxu0 0.0
        %909 = vmatmul.mubr.f32.gmra.mrb[0].mxu0 %v725
        %v910 = vpop.f32.mrb[0].mxu0
        %v911 = vadd.f32 %v685, %v910
        %v912 = vpop.f32.mrb[0].mxu0
        %913 = vmatprep.mubr.f32.mxu0 0.0
        %914 = vmatmul.mubr.f32.gmra.mrb[0].mxu0 %v728
        %v915 = vpop.f32.mrb[0].mxu0
        %v916 = vadd.f32 %v685, %v915
        %v917 = vpop.f32.mrb[0].mxu0
        %918 = vmatprep.mubr.f32.mxu0 0.0
        %919 = vmatmul.mubr.f32.gmra.mrb[0].mxu0 %v731
        %v920 = vpop.f32.mrb[0].mxu0
        %v921 = vadd.f32 %v685, %v920
        %v922 = vpop.f32.mrb[0].mxu0
        %923 = vmatprep.mubr.f32.mxu0 0.0
        %924 = vmatmul.mubr.f32.gmra.mrb[0].mxu0 %v734
        %v925 = vpop.f32.mrb[0].mxu0
        %v926 = vadd.f32 %v685, %v925
        %v927 = vpop.f32.mrb[0].mxu0
        %928 = vmatprep.mubr.f32.mxu0 0.0
        %929 = vmatmul.mubr.f32.gmra.mrb[0].mxu0 %v737
        %v930 = vpop.f32.mrb[0].mxu0
        %v931 = vadd.f32 %v685, %v930
        %v932 = vpop.f32.mrb[0].mxu0
        %933 = vmatprep.mubr.f32.mxu0 0.0
        %934 = vmatmul.mubr.f32.gmra.mrb[0].mxu0 %v740
        %v935 = vpop.f32.mrb[0].mxu0
        %v936 = vadd.f32 %v685, %v935
        %v937 = vpop.f32.mrb[0].mxu0
        %938 = vmatprep.mubr.f32.mxu0 0.0
        %939 = vmatmul.mubr.f32.gmra.mrb[0].mxu0 %v743
        %v940 = vpop.f32.mrb[0].mxu0
        %v941 = vadd.f32 %v685, %v940
        %v942 = vpop.f32.mrb[0].mxu0
        %943 = vmatprep.mubr.f32.mxu0 0.0
        %944 = vmatmul.mubr.f32.gmra.mrb[0].mxu0 %v746
        %v945 = vpop.f32.mrb[0].mxu0
        %v946 = vadd.f32 %v685, %v945
        %v947 = vpop.f32.mrb[0].mxu0
        %948 = vmatprep.mubr.f32.mxu0 0.0
        %949 = vmatmul.mubr.f32.gmra.mrb[0].mxu0 %v749
        %v950 = vpop.f32.mrb[0].mxu0
        %v951 = vadd.f32 %v685, %v950
        %v952 = vpop.f32.mrb[0].mxu0
        %953 = vmatprep.mubr.f32.mxu0 0.0
        %954 = vmatmul.mubr.f32.gmra.mrb[0].mxu0 %v752
        %v955 = vpop.f32.mrb[0].mxu0
        %v956 = vadd.f32 %v685, %v955
        %v957 = vpop.f32.mrb[0].mxu0
        %958 = vmatprep.mubr.f32.mxu0 0.0
        %959 = vmatmul.mubr.f32.gmra.mrb[0].mxu0 %v755
        %v960 = vpop.f32.mrb[0].mxu0
        %v961 = vadd.f32 %v685, %v960
        %v962 = vpop.f32.mrb[0].mxu0
        %963 = vmatprep.mubr.f32.mxu0 0.0
        %964 = vmatmul.mubr.f32.gmra.mrb[0].mxu0 %v758
        %v965 = vpop.f32.mrb[0].mxu0
        %v966 = vadd.f32 %v685, %v965
        %v967 = vpop.f32.mrb[0].mxu0
        %968 = vmatprep.mubr.f32.mxu0 0.0
        %969 = vmatmul.mubr.f32.gmra.mrb[0].mxu0 %v761
        %v970 = vpop.f32.mrb[0].mxu0
        %v971 = vadd.f32 %v685, %v970
        %v972 = vpop.f32.mrb[0].mxu0
        %973 = vmatprep.mubr.f32.mxu0 0.0
        %974 = vmatmul.mubr.f32.gmra.mrb[0].mxu0 %v764
        %v975 = vpop.f32.mrb[0].mxu0
        %v976 = vadd.f32 %v685, %v975
        %v977 = vpop.f32.mrb[0].mxu0
        %978 = vmatprep.mubr.f32.mxu0 0.0
        %979 = vmatmul.mubr.f32.gmra.mrb[0].mxu0 %v767
        %v980 = vpop.f32.mrb[0].mxu0
        %v981 = vadd.f32 %v685, %v980
        %v982 = vpop.f32.mrb[0].mxu0
        %983 = vmatprep.mubr.f32.mxu0 0.0
        %984 = vmatmul.mubr.f32.gmra.mrb[0].mxu0 %v770
        %v985 = vpop.f32.mrb[0].mxu0
        %v986 = vadd.f32 %v685, %v985
        %v987 = vpop.f32.mrb[0].mxu0
        %988 = vmatprep.mubr.f32.mxu0 0.0
        %989 = vmatmul.mubr.f32.gmra.mrb[0].mxu0 %v773
        %v990 = vpop.f32.mrb[0].mxu0
        %v991 = vadd.f32 %v685, %v990
        %v992 = vpop.f32.mrb[0].mxu0
        %993 = vmatprep.mubr.f32.mxu0 0.0
        %994 = vmatmul.mubr.f32.gmra.mrb[0].mxu0 %v776
        %v995 = vpop.f32.mrb[0].mxu0
        %v996 = vadd.f32 %v685, %v995
        %v997 = vpop.f32.mrb[0].mxu0
        %998 = vmatprep.mubr.f32.mxu0 0.0
        %999 = vmatmul.mubr.f32.gmra.mrb[0].mxu0 %v779
        %v1000 = vpop.f32.mrb[0].mxu0
        %v1001 = vadd.f32 %v685, %v1000
        %v1002 = vpop.f32.mrb[0].mxu0
        %1003 = vmatprep.mubr.f32.mxu0 0.0
        %1004 = vmatmul.mubr.f32.gmra.mrb[0].mxu0 %v782
        %v1005 = vpop.f32.mrb[0].mxu0
        %v1006 = vadd.f32 %v685, %v1005
        %v1007 = vpop.f32.mrb[0].mxu0
        %1008 = vdwg.mxu0
        %vm1009 = vcmask 130048
        %v1010 = vsel %vm1009, %v851, -inf
        %1011 = vmax.xlane.f32.xlu0 %v1010
        %v1012 = vpop.xlane.xlu0 %1011
        %v1013 = vsel %vm1009, %v856, -inf
        %1014 = vmax.xlane.f32.xlu0 %v1013
        %v1015 = vpop.xlane.xlu0 %1014
        %v1016 = vsel %vm1009, %v861, -inf
        %1017 = vmax.xlane.f32.xlu0 %v1016
        %v1018 = vpop.xlane.xlu0 %1017
        %v1019 = vsel %vm1009, %v866, -inf
        %1020 = vmax.xlane.f32.xlu0 %v1019
        %v1021 = vpop.xlane.xlu0 %1020
        %v1022 = vsel %vm1009, %v871, -inf
        %1023 = vmax.xlane.f32.xlu0 %v1022
        %v1024 = vpop.xlane.xlu0 %1023
        %v1025 = vsel %vm1009, %v876, -inf
        %1026 = vmax.xlane.f32.xlu0 %v1025
        %v1027 = vpop.xlane.xlu0 %1026
        %v1028 = vsel %vm1009, %v881, -inf
        %1029 = vmax.xlane.f32.xlu0 %v1028
        %v1030 = vpop.xlane.xlu0 %1029
        %v1031 = vsel %vm1009, %v886, -inf
        %1032 = vmax.xlane.f32.xlu0 %v1031
        %v1033 = vpop.xlane.xlu0 %1032
        %v1034 = vsel %vm1009, %v891, -inf
        %1035 = vmax.xlane.f32.xlu0 %v1034
        %v1036 = vpop.xlane.xlu0 %1035
        %v1037 = vsel %vm1009, %v896, -inf
        %1038 = vmax.xlane.f32.xlu0 %v1037
        %v1039 = vpop.xlane.xlu0 %1038
        %v1040 = vsel %vm1009, %v901, -inf
        %1041 = vmax.xlane.f32.xlu0 %v1040
        %v1042 = vpop.xlane.xlu0 %1041
        %v1043 = vsel %vm1009, %v906, -inf
        %1044 = vmax.xlane.f32.xlu0 %v1043
        %v1045 = vpop.xlane.xlu0 %1044
        %v1046 = vsel %vm1009, %v911, -inf
        %1047 = vmax.xlane.f32.xlu0 %v1046
        %v1048 = vpop.xlane.xlu0 %1047
        %v1049 = vsel %vm1009, %v916, -inf
        %1050 = vmax.xlane.f32.xlu0 %v1049
        %v1051 = vpop.xlane.xlu0 %1050
        %v1052 = vsel %vm1009, %v921, -inf
        %1053 = vmax.xlane.f32.xlu0 %v1052
        %v1054 = vpop.xlane.xlu0 %1053
        %v1055 = vsel %vm1009, %v926, -inf
        %1056 = vmax.xlane.f32.xlu0 %v1055
        %v1057 = vpop.xlane.xlu0 %1056
        %v1058 = vsel %vm1009, %v931, -inf
        %1059 = vmax.xlane.f32.xlu0 %v1058
        %v1060 = vpop.xlane.xlu0 %1059
        %v1061 = vsel %vm1009, %v936, -inf
        %1062 = vmax.xlane.f32.xlu0 %v1061
        %v1063 = vpop.xlane.xlu0 %1062
        %v1064 = vsel %vm1009, %v941, -inf
        %1065 = vmax.xlane.f32.xlu0 %v1064
        %v1066 = vpop.xlane.xlu0 %1065
        %v1067 = vsel %vm1009, %v946, -inf
        %1068 = vmax.xlane.f32.xlu0 %v1067
        %v1069 = vpop.xlane.xlu0 %1068
        %v1070 = vsel %vm1009, %v951, -inf
        %1071 = vmax.xlane.f32.xlu0 %v1070
        %v1072 = vpop.xlane.xlu0 %1071
        %v1073 = vsel %vm1009, %v956, -inf
        %1074 = vmax.xlane.f32.xlu0 %v1073
        %v1075 = vpop.xlane.xlu0 %1074
        %v1076 = vsel %vm1009, %v961, -inf
        %1077 = vmax.xlane.f32.xlu0 %v1076
        %v1078 = vpop.xlane.xlu0 %1077
        %v1079 = vsel %vm1009, %v966, -inf
        %1080 = vmax.xlane.f32.xlu0 %v1079
        %v1081 = vpop.xlane.xlu0 %1080
        %v1082 = vsel %vm1009, %v971, -inf
        %1083 = vmax.xlane.f32.xlu0 %v1082
        %v1084 = vpop.xlane.xlu0 %1083
        %v1085 = vsel %vm1009, %v976, -inf
        %1086 = vmax.xlane.f32.xlu0 %v1085
        %v1087 = vpop.xlane.xlu0 %1086
        %v1088 = vsel %vm1009, %v981, -inf
        %1089 = vmax.xlane.f32.xlu0 %v1088
        %v1090 = vpop.xlane.xlu0 %1089
        %v1091 = vsel %vm1009, %v986, -inf
        %1092 = vmax.xlane.f32.xlu0 %v1091
        %v1093 = vpop.xlane.xlu0 %1092
        %v1094 = vsel %vm1009, %v991, -inf
        %1095 = vmax.xlane.f32.xlu0 %v1094
        %v1096 = vpop.xlane.xlu0 %1095
        %v1097 = vsel %vm1009, %v996, -inf
        %1098 = vmax.xlane.f32.xlu0 %v1097
        %v1099 = vpop.xlane.xlu0 %1098
        %v1100 = vsel %vm1009, %v1001, -inf
        %1101 = vmax.xlane.f32.xlu0 %v1100
        %v1102 = vpop.xlane.xlu0 %1101
        %v1103 = vsel %vm1009, %v1006, -inf
        %1104 = vmax.xlane.f32.xlu0 %v1103
        %v1105 = vpop.xlane.xlu0 %1104
        %v1106 = vsub.f32 %v851, %v1012
        %v1107 = vsub.f32 %v856, %v1015
        %v1108 = vsub.f32 %v861, %v1018
        %v1109 = vsub.f32 %v866, %v1021
        %v1110 = vsub.f32 %v871, %v1024
        %v1111 = vsub.f32 %v876, %v1027
        %v1112 = vsub.f32 %v881, %v1030
        %v1113 = vsub.f32 %v886, %v1033
        %v1114 = vsub.f32 %v891, %v1036
        %v1115 = vsub.f32 %v896, %v1039
        %v1116 = vsub.f32 %v901, %v1042
        %v1117 = vsub.f32 %v906, %v1045
        %v1118 = vsub.f32 %v911, %v1048
        %v1119 = vsub.f32 %v916, %v1051
        %v1120 = vsub.f32 %v921, %v1054
        %v1121 = vsub.f32 %v926, %v1057
        %v1122 = vsub.f32 %v931, %v1060
        %v1123 = vsub.f32 %v936, %v1063
        %v1124 = vsub.f32 %v941, %v1066
        %v1125 = vsub.f32 %v946, %v1069
        %v1126 = vsub.f32 %v951, %v1072
        %v1127 = vsub.f32 %v956, %v1075
        %v1128 = vsub.f32 %v961, %v1078
        %v1129 = vsub.f32 %v966, %v1081
        %v1130 = vsub.f32 %v971, %v1084
        %v1131 = vsub.f32 %v976, %v1087
        %v1132 = vsub.f32 %v981, %v1090
        %v1133 = vsub.f32 %v986, %v1093
        %v1134 = vsub.f32 %v991, %v1096
        %v1135 = vsub.f32 %v996, %v1099
        %v1136 = vsub.f32 %v1001, %v1102
        %v1137 = vsub.f32 %v1006, %v1105
        %v1138 = vmul.f32 %v1106, 1.442695
        %v1139 = vpow.pop %v1138
        %v1140 = vmul.f32 %v1107, 1.442695
        %v1141 = vpow.pop %v1140
        %v1142 = vmul.f32 %v1108, 1.442695
        %v1143 = vpow.pop %v1142
        %v1144 = vmul.f32 %v1109, 1.442695
        %v1145 = vpow.pop %v1144
        %v1146 = vmul.f32 %v1110, 1.442695
        %v1147 = vpow.pop %v1146
        %v1148 = vmul.f32 %v1111, 1.442695
        %v1149 = vpow.pop %v1148
        %v1150 = vmul.f32 %v1112, 1.442695
        %v1151 = vpow.pop %v1150
        %v1152 = vmul.f32 %v1113, 1.442695
        %v1153 = vpow.pop %v1152
        %v1154 = vmul.f32 %v1114, 1.442695
        %v1155 = vpow.pop %v1154
        %v1156 = vmul.f32 %v1115, 1.442695
        %v1157 = vpow.pop %v1156
        %v1158 = vmul.f32 %v1116, 1.442695
        %v1159 = vpow.pop %v1158
        %v1160 = vmul.f32 %v1117, 1.442695
        %v1161 = vpow.pop %v1160
        %v1162 = vmul.f32 %v1118, 1.442695
        %v1163 = vpow.pop %v1162
        %v1164 = vmul.f32 %v1119, 1.442695
        %v1165 = vpow.pop %v1164
        %v1166 = vmul.f32 %v1120, 1.442695
        %v1167 = vpow.pop %v1166
        %v1168 = vmul.f32 %v1121, 1.442695
        %v1169 = vpow.pop %v1168
        %v1170 = vmul.f32 %v1122, 1.442695
        %v1171 = vpow.pop %v1170
        %v1172 = vmul.f32 %v1123, 1.442695
        %v1173 = vpow.pop %v1172
        %v1174 = vmul.f32 %v1124, 1.442695
        %v1175 = vpow.pop %v1174
        %v1176 = vmul.f32 %v1125, 1.442695
        %v1177 = vpow.pop %v1176
        %v1178 = vmul.f32 %v1126, 1.442695
        %v1179 = vpow.pop %v1178
        %v1180 = vmul.f32 %v1127, 1.442695
        %v1181 = vpow.pop %v1180
        %v1182 = vmul.f32 %v1128, 1.442695
        %v1183 = vpow.pop %v1182
        %v1184 = vmul.f32 %v1129, 1.442695
        %v1185 = vpow.pop %v1184
        %v1186 = vmul.f32 %v1130, 1.442695
        %v1187 = vpow.pop %v1186
        %v1188 = vmul.f32 %v1131, 1.442695
        %v1189 = vpow.pop %v1188
        %v1190 = vmul.f32 %v1132, 1.442695
        %v1191 = vpow.pop %v1190
        %v1192 = vmul.f32 %v1133, 1.442695
        %v1193 = vpow.pop %v1192
        %v1194 = vmul.f32 %v1134, 1.442695
        %v1195 = vpow.pop %v1194
        %v1196 = vmul.f32 %v1135, 1.442695
        %v1197 = vpow.pop %v1196
        %v1198 = vmul.f32 %v1136, 1.442695
        %v1199 = vpow.pop %v1198
        %v1200 = vmul.f32 %v1137, 1.442695
        %v1201 = vpow.pop %v1200
        %v1202 = vsel %vm1009, %v1139, 0.0
        %1203 = vadd.xlane.f32.xlu0 %v1202
        %v1204 = vpop.xlane.xlu0 %1203
        %v1205 = vsel %vm1009, %v1141, 0.0
        %1206 = vadd.xlane.f32.xlu0 %v1205
        %v1207 = vpop.xlane.xlu0 %1206
        %v1208 = vsel %vm1009, %v1143, 0.0
        %1209 = vadd.xlane.f32.xlu0 %v1208
        %v1210 = vpop.xlane.xlu0 %1209
        %v1211 = vsel %vm1009, %v1145, 0.0
        %1212 = vadd.xlane.f32.xlu0 %v1211
        %v1213 = vpop.xlane.xlu0 %1212
        %v1214 = vsel %vm1009, %v1147, 0.0
        %1215 = vadd.xlane.f32.xlu0 %v1214
        %v1216 = vpop.xlane.xlu0 %1215
        %v1217 = vsel %vm1009, %v1149, 0.0
        %1218 = vadd.xlane.f32.xlu0 %v1217
        %v1219 = vpop.xlane.xlu0 %1218
        %v1220 = vsel %vm1009, %v1151, 0.0
        %1221 = vadd.xlane.f32.xlu0 %v1220
        %v1222 = vpop.xlane.xlu0 %1221
        %v1223 = vsel %vm1009, %v1153, 0.0
        %1224 = vadd.xlane.f32.xlu0 %v1223
        %v1225 = vpop.xlane.xlu0 %1224
        %v1226 = vsel %vm1009, %v1155, 0.0
        %1227 = vadd.xlane.f32.xlu0 %v1226
        %v1228 = vpop.xlane.xlu0 %1227
        %v1229 = vsel %vm1009, %v1157, 0.0
        %1230 = vadd.xlane.f32.xlu0 %v1229
        %v1231 = vpop.xlane.xlu0 %1230
        %v1232 = vsel %vm1009, %v1159, 0.0
        %1233 = vadd.xlane.f32.xlu0 %v1232
        %v1234 = vpop.xlane.xlu0 %1233
        %v1235 = vsel %vm1009, %v1161, 0.0
        %1236 = vadd.xlane.f32.xlu0 %v1235
        %v1237 = vpop.xlane.xlu0 %1236
        %v1238 = vsel %vm1009, %v1163, 0.0
        %1239 = vadd.xlane.f32.xlu0 %v1238
        %v1240 = vpop.xlane.xlu0 %1239
        %v1241 = vsel %vm1009, %v1165, 0.0
        %1242 = vadd.xlane.f32.xlu0 %v1241
        %v1243 = vpop.xlane.xlu0 %1242
        %v1244 = vsel %vm1009, %v1167, 0.0
        %1245 = vadd.xlane.f32.xlu0 %v1244
        %v1246 = vpop.xlane.xlu0 %1245
        %v1247 = vsel %vm1009, %v1169, 0.0
        %1248 = vadd.xlane.f32.xlu0 %v1247
        %v1249 = vpop.xlane.xlu0 %1248
        %v1250 = vsel %vm1009, %v1171, 0.0
        %1251 = vadd.xlane.f32.xlu0 %v1250
        %v1252 = vpop.xlane.xlu0 %1251
        %v1253 = vsel %vm1009, %v1173, 0.0
        %1254 = vadd.xlane.f32.xlu0 %v1253
        %v1255 = vpop.xlane.xlu0 %1254
        %v1256 = vsel %vm1009, %v1175, 0.0
        %1257 = vadd.xlane.f32.xlu0 %v1256
        %v1258 = vpop.xlane.xlu0 %1257
        %v1259 = vsel %vm1009, %v1177, 0.0
        %1260 = vadd.xlane.f32.xlu0 %v1259
        %v1261 = vpop.xlane.xlu0 %1260
        %v1262 = vsel %vm1009, %v1179, 0.0
        %1263 = vadd.xlane.f32.xlu0 %v1262
        %v1264 = vpop.xlane.xlu0 %1263
        %v1265 = vsel %vm1009, %v1181, 0.0
        %1266 = vadd.xlane.f32.xlu0 %v1265
        %v1267 = vpop.xlane.xlu0 %1266
        %v1268 = vsel %vm1009, %v1183, 0.0
        %1269 = vadd.xlane.f32.xlu0 %v1268
        %v1270 = vpop.xlane.xlu0 %1269
        %v1271 = vsel %vm1009, %v1185, 0.0
        %1272 = vadd.xlane.f32.xlu0 %v1271
        %v1273 = vpop.xlane.xlu0 %1272
        %v1274 = vsel %vm1009, %v1187, 0.0
        %1275 = vadd.xlane.f32.xlu0 %v1274
        %v1276 = vpop.xlane.xlu0 %1275
        %v1277 = vsel %vm1009, %v1189, 0.0
        %1278 = vadd.xlane.f32.xlu0 %v1277
        %v1279 = vpop.xlane.xlu0 %1278
        %v1280 = vsel %vm1009, %v1191, 0.0
        %1281 = vadd.xlane.f32.xlu0 %v1280
        %v1282 = vpop.xlane.xlu0 %1281
        %v1283 = vsel %vm1009, %v1193, 0.0
        %1284 = vadd.xlane.f32.xlu0 %v1283
        %v1285 = vpop.xlane.xlu0 %1284
        %v1286 = vsel %vm1009, %v1195, 0.0
        %1287 = vadd.xlane.f32.xlu0 %v1286
        %v1288 = vpop.xlane.xlu0 %1287
        %v1289 = vsel %vm1009, %v1197, 0.0
        %1290 = vadd.xlane.f32.xlu0 %v1289
        %v1291 = vpop.xlane.xlu0 %1290
        %v1292 = vsel %vm1009, %v1199, 0.0
        %1293 = vadd.xlane.f32.xlu0 %v1292
        %v1294 = vpop.xlane.xlu0 %1293
        %v1295 = vsel %vm1009, %v1201, 0.0
        %1296 = vadd.xlane.f32.xlu0 %v1295
        %v1297 = vpop.xlane.xlu0 %1296
        %v1298 = vrcp.pop %v1204
        %v1299 = vrcp.pop %v1207
        %v1300 = vrcp.pop %v1210
        %v1301 = vrcp.pop %v1213
        %v1302 = vrcp.pop %v1216
        %v1303 = vrcp.pop %v1219
        %v1304 = vrcp.pop %v1222
        %v1305 = vrcp.pop %v1225
        %v1306 = vrcp.pop %v1228
        %v1307 = vrcp.pop %v1231
        %v1308 = vrcp.pop %v1234
        %v1309 = vrcp.pop %v1237
        %v1310 = vrcp.pop %v1240
        %v1311 = vrcp.pop %v1243
        %v1312 = vrcp.pop %v1246
        %v1313 = vrcp.pop %v1249
        %v1314 = vrcp.pop %v1252
        %v1315 = vrcp.pop %v1255
        %v1316 = vrcp.pop %v1258
        %v1317 = vrcp.pop %v1261
        %v1318 = vrcp.pop %v1264
        %v1319 = vrcp.pop %v1267
        %v1320 = vrcp.pop %v1270
        %v1321 = vrcp.pop %v1273
        %v1322 = vrcp.pop %v1276
        %v1323 = vrcp.pop %v1279
        %v1324 = vrcp.pop %v1282
        %v1325 = vrcp.pop %v1285
        %v1326 = vrcp.pop %v1288
        %v1327 = vrcp.pop %v1291
        %v1328 = vrcp.pop %v1294
        %v1329 = vrcp.pop %v1297
        %v1330 = vmul.f32 %v1139, %v1298
        %v1331 = vmul.f32 %v1141, %v1299
        %v1332 = vmul.f32 %v1143, %v1300
        %v1333 = vmul.f32 %v1145, %v1301
        %v1334 = vmul.f32 %v1147, %v1302
        %v1335 = vmul.f32 %v1149, %v1303
        %v1336 = vmul.f32 %v1151, %v1304
        %v1337 = vmul.f32 %v1153, %v1305
        %v1338 = vmul.f32 %v1155, %v1306
        %v1339 = vmul.f32 %v1157, %v1307
        %v1340 = vmul.f32 %v1159, %v1308
        %v1341 = vmul.f32 %v1161, %v1309
        %v1342 = vmul.f32 %v1163, %v1310
        %v1343 = vmul.f32 %v1165, %v1311
        %v1344 = vmul.f32 %v1167, %v1312
        %v1345 = vmul.f32 %v1169, %v1313
        %v1346 = vmul.f32 %v1171, %v1314
        %v1347 = vmul.f32 %v1173, %v1315
        %v1348 = vmul.f32 %v1175, %v1316
        %v1349 = vmul.f32 %v1177, %v1317
        %v1350 = vmul.f32 %v1179, %v1318
        %v1351 = vmul.f32 %v1181, %v1319
        %v1352 = vmul.f32 %v1183, %v1320
        %v1353 = vmul.f32 %v1185, %v1321
        %v1354 = vmul.f32 %v1187, %v1322
        %v1355 = vmul.f32 %v1189, %v1323
        %v1356 = vmul.f32 %v1191, %v1324
        %v1357 = vmul.f32 %v1193, %v1325
        %v1358 = vmul.f32 %v1195, %v1326
        %v1359 = vmul.f32 %v1197, %v1327
        %v1360 = vmul.f32 %v1199, %v1328
        %v1361 = vmul.f32 %v1201, %v1329
        %v1362 = vlog2.pop %v1204
        %v1363 = vmul.f32 %v1362, 0.6931472
        %v1364 = vlog2.pop %v1207
        %v1365 = vmul.f32 %v1364, 0.6931472
        %v1366 = vlog2.pop %v1210
        %v1367 = vmul.f32 %v1366, 0.6931472
        %v1368 = vlog2.pop %v1213
        %v1369 = vmul.f32 %v1368, 0.6931472
        %v1370 = vlog2.pop %v1216
        %v1371 = vmul.f32 %v1370, 0.6931472
        %v1372 = vlog2.pop %v1219
        %v1373 = vmul.f32 %v1372, 0.6931472
        %v1374 = vlog2.pop %v1222
        %v1375 = vmul.f32 %v1374, 0.6931472
        %v1376 = vlog2.pop %v1225
        %v1377 = vmul.f32 %v1376, 0.6931472
        %v1378 = vlog2.pop %v1228
        %v1379 = vmul.f32 %v1378, 0.6931472
        %v1380 = vlog2.pop %v1231
        %v1381 = vmul.f32 %v1380, 0.6931472
        %v1382 = vlog2.pop %v1234
        %v1383 = vmul.f32 %v1382, 0.6931472
        %v1384 = vlog2.pop %v1237
        %v1385 = vmul.f32 %v1384, 0.6931472
        %v1386 = vlog2.pop %v1240
        %v1387 = vmul.f32 %v1386, 0.6931472
        %v1388 = vlog2.pop %v1243
        %v1389 = vmul.f32 %v1388, 0.6931472
        %v1390 = vlog2.pop %v1246
        %v1391 = vmul.f32 %v1390, 0.6931472
        %v1392 = vlog2.pop %v1249
        %v1393 = vmul.f32 %v1392, 0.6931472
        %v1394 = vlog2.pop %v1252
        %v1395 = vmul.f32 %v1394, 0.6931472
        %v1396 = vlog2.pop %v1255
        %v1397 = vmul.f32 %v1396, 0.6931472
        %v1398 = vlog2.pop %v1258
        %v1399 = vmul.f32 %v1398, 0.6931472
        %v1400 = vlog2.pop %v1261
        %v1401 = vmul.f32 %v1400, 0.6931472
        %v1402 = vlog2.pop %v1264
        %v1403 = vmul.f32 %v1402, 0.6931472
        %v1404 = vlog2.pop %v1267
        %v1405 = vmul.f32 %v1404, 0.6931472
        %v1406 = vlog2.pop %v1270
        %v1407 = vmul.f32 %v1406, 0.6931472
        %v1408 = vlog2.pop %v1273
        %v1409 = vmul.f32 %v1408, 0.6931472
        %v1410 = vlog2.pop %v1276
        %v1411 = vmul.f32 %v1410, 0.6931472
        %v1412 = vlog2.pop %v1279
        %v1413 = vmul.f32 %v1412, 0.6931472
        %v1414 = vlog2.pop %v1282
        %v1415 = vmul.f32 %v1414, 0.6931472
        %v1416 = vlog2.pop %v1285
        %v1417 = vmul.f32 %v1416, 0.6931472
        %v1418 = vlog2.pop %v1288
        %v1419 = vmul.f32 %v1418, 0.6931472
        %v1420 = vlog2.pop %v1291
        %v1421 = vmul.f32 %v1420, 0.6931472
        %v1422 = vlog2.pop %v1294
        %v1423 = vmul.f32 %v1422, 0.6931472
        %v1424 = vlog2.pop %v1297
        %v1425 = vmul.f32 %v1424, 0.6931472
        %v1426 = vadd.f32 %v1012, %v1363
        %v1427 = vadd.f32 %v1015, %v1365
        %v1428 = vadd.f32 %v1018, %v1367
        %v1429 = vadd.f32 %v1021, %v1369
        %v1430 = vadd.f32 %v1024, %v1371
        %v1431 = vadd.f32 %v1027, %v1373
        %v1432 = vadd.f32 %v1030, %v1375
        %v1433 = vadd.f32 %v1033, %v1377
        %v1434 = vadd.f32 %v1036, %v1379
        %v1435 = vadd.f32 %v1039, %v1381
        %v1436 = vadd.f32 %v1042, %v1383
        %v1437 = vadd.f32 %v1045, %v1385
        %v1438 = vadd.f32 %v1048, %v1387
        %v1439 = vadd.f32 %v1051, %v1389
        %v1440 = vadd.f32 %v1054, %v1391
        %v1441 = vadd.f32 %v1057, %v1393
        %v1442 = vadd.f32 %v1060, %v1395
        %v1443 = vadd.f32 %v1063, %v1397
        %v1444 = vadd.f32 %v1066, %v1399
        %v1445 = vadd.f32 %v1069, %v1401
        %v1446 = vadd.f32 %v1072, %v1403
        %v1447 = vadd.f32 %v1075, %v1405
        %v1448 = vadd.f32 %v1078, %v1407
        %v1449 = vadd.f32 %v1081, %v1409
        %v1450 = vadd.f32 %v1084, %v1411
        %v1451 = vadd.f32 %v1087, %v1413
        %v1452 = vadd.f32 %v1090, %v1415
        %v1453 = vadd.f32 %v1093, %v1417
        %v1454 = vadd.f32 %v1096, %v1419
        %v1455 = vadd.f32 %v1099, %v1421
        %v1456 = vadd.f32 %v1102, %v1423
        %v1457 = vadd.f32 %v1105, %v1425
        %v1458 = vld [vmem:[%s272] sm:$0xff]
        %v1459 = vld [vmem:[%s272 + $0x8] sm:$0xff]
        %v1460 = vld [vmem:[%s272 + $0x10] sm:$0xff]
        %v1461 = vld [vmem:[%s272 + $0x18] sm:$0xff]
        %v1462 = vld [vmem:[%s272 + $0x20] sm:$0xff]
        %v1463 = vld [vmem:[%s272 + $0x28] sm:$0xff]
        %v1464 = vld [vmem:[%s272 + $0x30] sm:$0xff]
        %v1465 = vld [vmem:[%s272 + $0x38] sm:$0xff]
        %v1466 = vld [vmem:[%s272 + $0x40] sm:$0xff]
        %v1467 = vld [vmem:[%s272 + $0x48] sm:$0xff]
        %v1468 = vld [vmem:[%s272 + $0x50] sm:$0xff]
        %v1469 = vld [vmem:[%s272 + $0x58] sm:$0xff]
        %v1470 = vld [vmem:[%s272 + $0x60] sm:$0xff]
        %v1471 = vld [vmem:[%s272 + $0x68] sm:$0xff]
        %v1472 = vld [vmem:[%s272 + $0x70] sm:$0xff]
        %v1473 = vld [vmem:[%s272 + $0x78] sm:$0xff]
        %v1474 = vld [vmem:[%s272 + $0x80] sm:$0xff]
        %v1475 = vld [vmem:[%s272 + $0x88] sm:$0xff]
        %v1476 = vld [vmem:[%s272 + $0x90] sm:$0xff]
        %v1477 = vld [vmem:[%s272 + $0x98] sm:$0xff]
        %v1478 = vld [vmem:[%s272 + $0xa0] sm:$0xff]
        %v1479 = vld [vmem:[%s272 + $0xa8] sm:$0xff]
        %v1480 = vld [vmem:[%s272 + $0xb0] sm:$0xff]
        %v1481 = vld [vmem:[%s272 + $0xb8] sm:$0xff]
        %v1482 = vld [vmem:[%s272 + $0xc0] sm:$0xff]
        %v1483 = vld [vmem:[%s272 + $0xc8] sm:$0xff]
        %v1484 = vld [vmem:[%s272 + $0xd0] sm:$0xff]
        %v1485 = vld [vmem:[%s272 + $0xd8] sm:$0xff]
        %v1486 = vld [vmem:[%s272 + $0xe0] sm:$0xff]
        %v1487 = vld [vmem:[%s272 + $0xe8] sm:$0xff]
        %v1488 = vld [vmem:[%s272 + $0xf0] sm:$0xff]
        %v1489 = vld [vmem:[%s272 + $0xf8] sm:$0xff]
        %v1490 = vlaneseq
        %v1491 = vand.u32 %v1490, 127
        %1492 = vset.pattern.permute.xlu0 0
        %1493 = vperm.xlu0 %1492, %v1458
        %v1494 = vpop.permute.xlu0 %1493
        %1495 = vset.pattern.permute.xlu0 0
        %1496 = vperm.xlu0 %1495, %v1459
        %v1497 = vpop.permute.xlu0 %1496
        %1498 = vset.pattern.permute.xlu0 0
        %1499 = vperm.xlu0 %1498, %v1460
        %v1500 = vpop.permute.xlu0 %1499
        %1501 = vset.pattern.permute.xlu0 0
        %1502 = vperm.xlu0 %1501, %v1461
        %v1503 = vpop.permute.xlu0 %1502
        %1504 = vset.pattern.permute.xlu0 0
        %1505 = vperm.xlu0 %1504, %v1462
        %v1506 = vpop.permute.xlu0 %1505
        %1507 = vset.pattern.permute.xlu0 0
        %1508 = vperm.xlu0 %1507, %v1463
        %v1509 = vpop.permute.xlu0 %1508
        %1510 = vset.pattern.permute.xlu0 0
        %1511 = vperm.xlu0 %1510, %v1464
        %v1512 = vpop.permute.xlu0 %1511
        %1513 = vset.pattern.permute.xlu0 0
        %1514 = vperm.xlu0 %1513, %v1465
        %v1515 = vpop.permute.xlu0 %1514
        %1516 = vset.pattern.permute.xlu0 0
        %1517 = vperm.xlu0 %1516, %v1466
        %v1518 = vpop.permute.xlu0 %1517
        %1519 = vset.pattern.permute.xlu0 0
        %1520 = vperm.xlu0 %1519, %v1467
        %v1521 = vpop.permute.xlu0 %1520
        %1522 = vset.pattern.permute.xlu0 0
        %1523 = vperm.xlu0 %1522, %v1468
        %v1524 = vpop.permute.xlu0 %1523
        %1525 = vset.pattern.permute.xlu0 0
        %1526 = vperm.xlu0 %1525, %v1469
        %v1527 = vpop.permute.xlu0 %1526
        %1528 = vset.pattern.permute.xlu0 0
        %1529 = vperm.xlu0 %1528, %v1470
        %v1530 = vpop.permute.xlu0 %1529
        %1531 = vset.pattern.permute.xlu0 0
        %1532 = vperm.xlu0 %1531, %v1471
        %v1533 = vpop.permute.xlu0 %1532
        %1534 = vset.pattern.permute.xlu0 0
        %1535 = vperm.xlu0 %1534, %v1472
        %v1536 = vpop.permute.xlu0 %1535
        %1537 = vset.pattern.permute.xlu0 0
        %1538 = vperm.xlu0 %1537, %v1473
        %v1539 = vpop.permute.xlu0 %1538
        %1540 = vset.pattern.permute.xlu0 0
        %1541 = vperm.xlu0 %1540, %v1474
        %v1542 = vpop.permute.xlu0 %1541
        %1543 = vset.pattern.permute.xlu0 0
        %1544 = vperm.xlu0 %1543, %v1475
        %v1545 = vpop.permute.xlu0 %1544
        %1546 = vset.pattern.permute.xlu0 0
        %1547 = vperm.xlu0 %1546, %v1476
        %v1548 = vpop.permute.xlu0 %1547
        %1549 = vset.pattern.permute.xlu0 0
        %1550 = vperm.xlu0 %1549, %v1477
        %v1551 = vpop.permute.xlu0 %1550
        %1552 = vset.pattern.permute.xlu0 0
        %1553 = vperm.xlu0 %1552, %v1478
        %v1554 = vpop.permute.xlu0 %1553
        %1555 = vset.pattern.permute.xlu0 0
        %1556 = vperm.xlu0 %1555, %v1479
        %v1557 = vpop.permute.xlu0 %1556
        %1558 = vset.pattern.permute.xlu0 0
        %1559 = vperm.xlu0 %1558, %v1480
        %v1560 = vpop.permute.xlu0 %1559
        %1561 = vset.pattern.permute.xlu0 0
        %1562 = vperm.xlu0 %1561, %v1481
        %v1563 = vpop.permute.xlu0 %1562
        %1564 = vset.pattern.permute.xlu0 0
        %1565 = vperm.xlu0 %1564, %v1482
        %v1566 = vpop.permute.xlu0 %1565
        %1567 = vset.pattern.permute.xlu0 0
        %1568 = vperm.xlu0 %1567, %v1483
        %v1569 = vpop.permute.xlu0 %1568
        %1570 = vset.pattern.permute.xlu0 0
        %1571 = vperm.xlu0 %1570, %v1484
        %v1572 = vpop.permute.xlu0 %1571
        %1573 = vset.pattern.permute.xlu0 0
        %1574 = vperm.xlu0 %1573, %v1485
        %v1575 = vpop.permute.xlu0 %1574
        %1576 = vset.pattern.permute.xlu0 0
        %1577 = vperm.xlu0 %1576, %v1486
        %v1578 = vpop.permute.xlu0 %1577
        %1579 = vset.pattern.permute.xlu0 0
        %1580 = vperm.xlu0 %1579, %v1487
        %v1581 = vpop.permute.xlu0 %1580
        %1582 = vset.pattern.permute.xlu0 0
        %1583 = vperm.xlu0 %1582, %v1488
        %v1584 = vpop.permute.xlu0 %1583
        %1585 = vset.pattern.permute.xlu0 0
        %1586 = vperm.xlu0 %1585, %v1489
        %v1587 = vpop.permute.xlu0 %1586
        %vm1588 = vcmp.eq.s32.totalorder %v1491, %v1494
        %vm1589 = vcmp.eq.s32.totalorder %v1491, %v1497
        %vm1590 = vcmp.eq.s32.totalorder %v1491, %v1500
        %vm1591 = vcmp.eq.s32.totalorder %v1491, %v1503
        %vm1592 = vcmp.eq.s32.totalorder %v1491, %v1506
        %vm1593 = vcmp.eq.s32.totalorder %v1491, %v1509
        %vm1594 = vcmp.eq.s32.totalorder %v1491, %v1512
        %vm1595 = vcmp.eq.s32.totalorder %v1491, %v1515
        %vm1596 = vcmp.eq.s32.totalorder %v1491, %v1518
        %vm1597 = vcmp.eq.s32.totalorder %v1491, %v1521
        %vm1598 = vcmp.eq.s32.totalorder %v1491, %v1524
        %vm1599 = vcmp.eq.s32.totalorder %v1491, %v1527
        %vm1600 = vcmp.eq.s32.totalorder %v1491, %v1530
        %vm1601 = vcmp.eq.s32.totalorder %v1491, %v1533
        %vm1602 = vcmp.eq.s32.totalorder %v1491, %v1536
        %vm1603 = vcmp.eq.s32.totalorder %v1491, %v1539
        %vm1604 = vcmp.eq.s32.totalorder %v1491, %v1542
        %vm1605 = vcmp.eq.s32.totalorder %v1491, %v1545
        %vm1606 = vcmp.eq.s32.totalorder %v1491, %v1548
        %vm1607 = vcmp.eq.s32.totalorder %v1491, %v1551
        %vm1608 = vcmp.eq.s32.totalorder %v1491, %v1554
        %vm1609 = vcmp.eq.s32.totalorder %v1491, %v1557
        %vm1610 = vcmp.eq.s32.totalorder %v1491, %v1560
        %vm1611 = vcmp.eq.s32.totalorder %v1491, %v1563
        %vm1612 = vcmp.eq.s32.totalorder %v1491, %v1566
        %vm1613 = vcmp.eq.s32.totalorder %v1491, %v1569
        %vm1614 = vcmp.eq.s32.totalorder %v1491, %v1572
        %vm1615 = vcmp.eq.s32.totalorder %v1491, %v1575
        %vm1616 = vcmp.eq.s32.totalorder %v1491, %v1578
        %vm1617 = vcmp.eq.s32.totalorder %v1491, %v1581
        %vm1618 = vcmp.eq.s32.totalorder %v1491, %v1584
        %vm1619 = vcmp.eq.s32.totalorder %v1491, %v1587
        %v1620 = vsel %vm1588, %v851, 0.0
        %v1621 = vsel %vm1589, %v856, 0.0
        %v1622 = vsel %vm1590, %v861, 0.0
        %v1623 = vsel %vm1591, %v866, 0.0
        %v1624 = vsel %vm1592, %v871, 0.0
        %v1625 = vsel %vm1593, %v876, 0.0
        %v1626 = vsel %vm1594, %v881, 0.0
        %v1627 = vsel %vm1595, %v886, 0.0
        %v1628 = vsel %vm1596, %v891, 0.0
        %v1629 = vsel %vm1597, %v896, 0.0
        %v1630 = vsel %vm1598, %v901, 0.0
        %v1631 = vsel %vm1599, %v906, 0.0
        %v1632 = vsel %vm1600, %v911, 0.0
        %v1633 = vsel %vm1601, %v916, 0.0
        %v1634 = vsel %vm1602, %v921, 0.0
        %v1635 = vsel %vm1603, %v926, 0.0
        %v1636 = vsel %vm1604, %v931, 0.0
        %v1637 = vsel %vm1605, %v936, 0.0
        %v1638 = vsel %vm1606, %v941, 0.0
        %v1639 = vsel %vm1607, %v946, 0.0
        %v1640 = vsel %vm1608, %v951, 0.0
        %v1641 = vsel %vm1609, %v956, 0.0
        %v1642 = vsel %vm1610, %v961, 0.0
        %v1643 = vsel %vm1611, %v966, 0.0
        %v1644 = vsel %vm1612, %v971, 0.0
        %v1645 = vsel %vm1613, %v976, 0.0
        %v1646 = vsel %vm1614, %v981, 0.0
        %v1647 = vsel %vm1615, %v986, 0.0
        %v1648 = vsel %vm1616, %v991, 0.0
        %v1649 = vsel %vm1617, %v996, 0.0
        %v1650 = vsel %vm1618, %v1001, 0.0
        %v1651 = vsel %vm1619, %v1006, 0.0
        %v1652 = vsel %vm1009, %v1620, 0.0
        %1653 = vadd.xlane.f32.xlu0 %v1652
        %v1654 = vpop.xlane.xlu0 %1653
        %v1655 = vsel %vm1009, %v1621, 0.0
        %1656 = vadd.xlane.f32.xlu0 %v1655
        %v1657 = vpop.xlane.xlu0 %1656
        %v1658 = vsel %vm1009, %v1622, 0.0
        %1659 = vadd.xlane.f32.xlu0 %v1658
        %v1660 = vpop.xlane.xlu0 %1659
        %v1661 = vsel %vm1009, %v1623, 0.0
        %1662 = vadd.xlane.f32.xlu0 %v1661
        %v1663 = vpop.xlane.xlu0 %1662
        %v1664 = vsel %vm1009, %v1624, 0.0
        %1665 = vadd.xlane.f32.xlu0 %v1664
        %v1666 = vpop.xlane.xlu0 %1665
        %v1667 = vsel %vm1009, %v1625, 0.0
        %1668 = vadd.xlane.f32.xlu0 %v1667
        %v1669 = vpop.xlane.xlu0 %1668
        %v1670 = vsel %vm1009, %v1626, 0.0
        %1671 = vadd.xlane.f32.xlu0 %v1670
        %v1672 = vpop.xlane.xlu0 %1671
        %v1673 = vsel %vm1009, %v1627, 0.0
        %1674 = vadd.xlane.f32.xlu0 %v1673
        %v1675 = vpop.xlane.xlu0 %1674
        %v1676 = vsel %vm1009, %v1628, 0.0
        %1677 = vadd.xlane.f32.xlu0 %v1676
        %v1678 = vpop.xlane.xlu0 %1677
        %v1679 = vsel %vm1009, %v1629, 0.0
        %1680 = vadd.xlane.f32.xlu0 %v1679
        %v1681 = vpop.xlane.xlu0 %1680
        %v1682 = vsel %vm1009, %v1630, 0.0
        %1683 = vadd.xlane.f32.xlu0 %v1682
        %v1684 = vpop.xlane.xlu0 %1683
        %v1685 = vsel %vm1009, %v1631, 0.0
        %1686 = vadd.xlane.f32.xlu0 %v1685
        %v1687 = vpop.xlane.xlu0 %1686
        %v1688 = vsel %vm1009, %v1632, 0.0
        %1689 = vadd.xlane.f32.xlu0 %v1688
        %v1690 = vpop.xlane.xlu0 %1689
        %v1691 = vsel %vm1009, %v1633, 0.0
        %1692 = vadd.xlane.f32.xlu0 %v1691
        %v1693 = vpop.xlane.xlu0 %1692
        %v1694 = vsel %vm1009, %v1634, 0.0
        %1695 = vadd.xlane.f32.xlu0 %v1694
        %v1696 = vpop.xlane.xlu0 %1695
        %v1697 = vsel %vm1009, %v1635, 0.0
        %1698 = vadd.xlane.f32.xlu0 %v1697
        %v1699 = vpop.xlane.xlu0 %1698
        %v1700 = vsel %vm1009, %v1636, 0.0
        %1701 = vadd.xlane.f32.xlu0 %v1700
        %v1702 = vpop.xlane.xlu0 %1701
        %v1703 = vsel %vm1009, %v1637, 0.0
        %1704 = vadd.xlane.f32.xlu0 %v1703
        %v1705 = vpop.xlane.xlu0 %1704
        %v1706 = vsel %vm1009, %v1638, 0.0
        %1707 = vadd.xlane.f32.xlu0 %v1706
        %v1708 = vpop.xlane.xlu0 %1707
        %v1709 = vsel %vm1009, %v1639, 0.0
        %1710 = vadd.xlane.f32.xlu0 %v1709
        %v1711 = vpop.xlane.xlu0 %1710
        %v1712 = vsel %vm1009, %v1640, 0.0
        %1713 = vadd.xlane.f32.xlu0 %v1712
        %v1714 = vpop.xlane.xlu0 %1713
        %v1715 = vsel %vm1009, %v1641, 0.0
        %1716 = vadd.xlane.f32.xlu0 %v1715
        %v1717 = vpop.xlane.xlu0 %1716
        %v1718 = vsel %vm1009, %v1642, 0.0
        %1719 = vadd.xlane.f32.xlu0 %v1718
        %v1720 = vpop.xlane.xlu0 %1719
        %v1721 = vsel %vm1009, %v1643, 0.0
        %1722 = vadd.xlane.f32.xlu0 %v1721
        %v1723 = vpop.xlane.xlu0 %1722
        %v1724 = vsel %vm1009, %v1644, 0.0
        %1725 = vadd.xlane.f32.xlu0 %v1724
        %v1726 = vpop.xlane.xlu0 %1725
        %v1727 = vsel %vm1009, %v1645, 0.0
        %1728 = vadd.xlane.f32.xlu0 %v1727
        %v1729 = vpop.xlane.xlu0 %1728
        %v1730 = vsel %vm1009, %v1646, 0.0
        %1731 = vadd.xlane.f32.xlu0 %v1730
        %v1732 = vpop.xlane.xlu0 %1731
        %v1733 = vsel %vm1009, %v1647, 0.0
        %1734 = vadd.xlane.f32.xlu0 %v1733
        %v1735 = vpop.xlane.xlu0 %1734
        %v1736 = vsel %vm1009, %v1648, 0.0
        %1737 = vadd.xlane.f32.xlu0 %v1736
        %v1738 = vpop.xlane.xlu0 %1737
        %v1739 = vsel %vm1009, %v1649, 0.0
        %1740 = vadd.xlane.f32.xlu0 %v1739
        %v1741 = vpop.xlane.xlu0 %1740
        %v1742 = vsel %vm1009, %v1650, 0.0
        %1743 = vadd.xlane.f32.xlu0 %v1742
        %v1744 = vpop.xlane.xlu0 %1743
        %v1745 = vsel %vm1009, %v1651, 0.0
        %1746 = vadd.xlane.f32.xlu0 %v1745
        %v1747 = vpop.xlane.xlu0 %1746
        %v1748 = vsub.f32 %v1426, %v1654
        %v1749 = vsub.f32 %v1427, %v1657
        %v1750 = vsub.f32 %v1428, %v1660
        %v1751 = vsub.f32 %v1429, %v1663
        %v1752 = vsub.f32 %v1430, %v1666
        %v1753 = vsub.f32 %v1431, %v1669
        %v1754 = vsub.f32 %v1432, %v1672
        %v1755 = vsub.f32 %v1433, %v1675
        %v1756 = vsub.f32 %v1434, %v1678
        %v1757 = vsub.f32 %v1435, %v1681
        %v1758 = vsub.f32 %v1436, %v1684
        %v1759 = vsub.f32 %v1437, %v1687
        %v1760 = vsub.f32 %v1438, %v1690
        %v1761 = vsub.f32 %v1439, %v1693
        %v1762 = vsub.f32 %v1440, %v1696
        %v1763 = vsub.f32 %v1441, %v1699
        %v1764 = vsub.f32 %v1442, %v1702
        %v1765 = vsub.f32 %v1443, %v1705
        %v1766 = vsub.f32 %v1444, %v1708
        %v1767 = vsub.f32 %v1445, %v1711
        %v1768 = vsub.f32 %v1446, %v1714
        %v1769 = vsub.f32 %v1447, %v1717
        %v1770 = vsub.f32 %v1448, %v1720
        %v1771 = vsub.f32 %v1449, %v1723
        %v1772 = vsub.f32 %v1450, %v1726
        %v1773 = vsub.f32 %v1451, %v1729
        %v1774 = vsub.f32 %v1452, %v1732
        %v1775 = vsub.f32 %v1453, %v1735
        %v1776 = vsub.f32 %v1454, %v1738
        %v1777 = vsub.f32 %v1455, %v1741
        %v1778 = vsub.f32 %v1456, %v1744
        %v1779 = vsub.f32 %v1457, %v1747
        %1780 = vst.msk [vmem:[%s261] sm:$0xff] %vm687, %v482
        %1781 = vst.msk [vmem:[%s261 + $0x10] sm:$0xff] %vm687, %v487
        %1782 = vst.msk [vmem:[%s261 + $0x20] sm:$0xff] %vm687, %v492
        %1783 = vst.msk [vmem:[%s261 + $0x30] sm:$0xff] %vm687, %v497
        %1784 = vst.msk [vmem:[%s261 + $0x40] sm:$0xff] %vm687, %v502
        %1785 = vst.msk [vmem:[%s261 + $0x50] sm:$0xff] %vm687, %v507
        %1786 = vst.msk [vmem:[%s261 + $0x60] sm:$0xff] %vm687, %v512
        %1787 = vst.msk [vmem:[%s261 + $0x70] sm:$0xff] %vm687, %v517
        %1788 = vst.msk [vmem:[%s261 + $0x80] sm:$0xff] %vm687, %v522
        %1789 = vst.msk [vmem:[%s261 + $0x90] sm:$0xff] %vm687, %v527
        %1790 = vst.msk [vmem:[%s261 + $0xa0] sm:$0xff] %vm687, %v532
        %1791 = vst.msk [vmem:[%s261 + $0xb0] sm:$0xff] %vm687, %v537
        %1792 = vst.msk [vmem:[%s261 + $0xc0] sm:$0xff] %vm687, %v542
        %1793 = vst.msk [vmem:[%s261 + $0xd0] sm:$0xff] %vm687, %v547
        %1794 = vst.msk [vmem:[%s261 + $0xe0] sm:$0xff] %vm687, %v552
        %1795 = vst.msk [vmem:[%s261 + $0xf0] sm:$0xff] %vm687, %v557
        %1796 = vst.msk [vmem:[%s261 + $0x100] sm:$0xff] %vm687, %v562
        %1797 = vst.msk [vmem:[%s261 + $0x110] sm:$0xff] %vm687, %v567
        %1798 = vst.msk [vmem:[%s261 + $0x120] sm:$0xff] %vm687, %v572
        %1799 = vst.msk [vmem:[%s261 + $0x130] sm:$0xff] %vm687, %v577
        %1800 = vst.msk [vmem:[%s261 + $0x140] sm:$0xff] %vm687, %v582
        %1801 = vst.msk [vmem:[%s261 + $0x150] sm:$0xff] %vm687, %v587
        %1802 = vst.msk [vmem:[%s261 + $0x160] sm:$0xff] %vm687, %v592
        %1803 = vst.msk [vmem:[%s261 + $0x170] sm:$0xff] %vm687, %v597
        %1804 = vst.msk [vmem:[%s261 + $0x180] sm:$0xff] %vm687, %v602
        %1805 = vst.msk [vmem:[%s261 + $0x190] sm:$0xff] %vm687, %v607
        %1806 = vst.msk [vmem:[%s261 + $0x1a0] sm:$0xff] %vm687, %v612
        %1807 = vst.msk [vmem:[%s261 + $0x1b0] sm:$0xff] %vm687, %v617
        %1808 = vst.msk [vmem:[%s261 + $0x1c0] sm:$0xff] %vm687, %v622
        %1809 = vst.msk [vmem:[%s261 + $0x1d0] sm:$0xff] %vm687, %v627
        %1810 = vst.msk [vmem:[%s261 + $0x1e0] sm:$0xff] %vm687, %v632
        %1811 = vst.msk [vmem:[%s261 + $0x1f0] sm:$0xff] %vm687, %v637
        %1812 = vrot.lane.b32.xlu0 %v640, 64
        %v1813 = vpop.permute.xlu0 %1812
        %1814 = vrot.lane.b32.xlu0 %v641, 64
        %v1815 = vpop.permute.xlu0 %1814
        %1816 = vrot.lane.b32.xlu0 %v642, 64
        %v1817 = vpop.permute.xlu0 %1816
        %1818 = vrot.lane.b32.xlu0 %v643, 64
        %v1819 = vpop.permute.xlu0 %1818
        %1820 = vrot.lane.b32.xlu0 %v644, 64
        %v1821 = vpop.permute.xlu0 %1820
        %1822 = vrot.lane.b32.xlu0 %v645, 64
        %v1823 = vpop.permute.xlu0 %1822
        %1824 = vrot.lane.b32.xlu0 %v646, 64
        %v1825 = vpop.permute.xlu0 %1824
        %1826 = vrot.lane.b32.xlu0 %v647, 64
        %v1827 = vpop.permute.xlu0 %1826
        %1828 = vrot.lane.b32.xlu0 %v648, 64
        %v1829 = vpop.permute.xlu0 %1828
        %1830 = vrot.lane.b32.xlu0 %v649, 64
        %v1831 = vpop.permute.xlu0 %1830
        %1832 = vrot.lane.b32.xlu0 %v650, 64
        %v1833 = vpop.permute.xlu0 %1832
        %1834 = vrot.lane.b32.xlu0 %v651, 64
        %v1835 = vpop.permute.xlu0 %1834
        %1836 = vrot.lane.b32.xlu0 %v652, 64
        %v1837 = vpop.permute.xlu0 %1836
        %1838 = vrot.lane.b32.xlu0 %v653, 64
        %v1839 = vpop.permute.xlu0 %1838
        %1840 = vrot.lane.b32.xlu0 %v654, 64
        %v1841 = vpop.permute.xlu0 %1840
        %1842 = vrot.lane.b32.xlu0 %v655, 64
        %v1843 = vpop.permute.xlu0 %1842
        %1844 = vrot.lane.b32.xlu0 %v656, 64
        %v1845 = vpop.permute.xlu0 %1844
        %1846 = vrot.lane.b32.xlu0 %v657, 64
        %v1847 = vpop.permute.xlu0 %1846
        %1848 = vrot.lane.b32.xlu0 %v658, 64
        %v1849 = vpop.permute.xlu0 %1848
        %1850 = vrot.lane.b32.xlu0 %v659, 64
        %v1851 = vpop.permute.xlu0 %1850
        %1852 = vrot.lane.b32.xlu0 %v660, 64
        %v1853 = vpop.permute.xlu0 %1852
        %1854 = vrot.lane.b32.xlu0 %v661, 64
        %v1855 = vpop.permute.xlu0 %1854
        %1856 = vrot.lane.b32.xlu0 %v662, 64
        %v1857 = vpop.permute.xlu0 %1856
        %1858 = vrot.lane.b32.xlu0 %v663, 64
        %v1859 = vpop.permute.xlu0 %1858
        %1860 = vrot.lane.b32.xlu0 %v664, 64
        %v1861 = vpop.permute.xlu0 %1860
        %1862 = vrot.lane.b32.xlu0 %v665, 64
        %v1863 = vpop.permute.xlu0 %1862
        %1864 = vrot.lane.b32.xlu0 %v666, 64
        %v1865 = vpop.permute.xlu0 %1864
        %1866 = vrot.lane.b32.xlu0 %v667, 64
        %v1867 = vpop.permute.xlu0 %1866
        %1868 = vrot.lane.b32.xlu0 %v668, 64
        %v1869 = vpop.permute.xlu0 %1868
        %1870 = vrot.lane.b32.xlu0 %v669, 64
        %v1871 = vpop.permute.xlu0 %1870
        %1872 = vrot.lane.b32.xlu0 %v670, 64
        %v1873 = vpop.permute.xlu0 %1872
        %1874 = vrot.lane.b32.xlu0 %v671, 64
        %v1875 = vpop.permute.xlu0 %1874
        %vm1908 = vcmask 1048064
        %1909 = vst.msk [vmem:[%s261] sm:$0xff] %vm1908, %v1813
        %1910 = vst.msk [vmem:[%s261 + $0x10] sm:$0xff] %vm1908, %v1815
        %1911 = vst.msk [vmem:[%s261 + $0x20] sm:$0xff] %vm1908, %v1817
        %1912 = vst.msk [vmem:[%s261 + $0x30] sm:$0xff] %vm1908, %v1819
        %1913 = vst.msk [vmem:[%s261 + $0x40] sm:$0xff] %vm1908, %v1821
        %1914 = vst.msk [vmem:[%s261 + $0x50] sm:$0xff] %vm1908, %v1823
        %1915 = vst.msk [vmem:[%s261 + $0x60] sm:$0xff] %vm1908, %v1825
        %1916 = vst.msk [vmem:[%s261 + $0x70] sm:$0xff] %vm1908, %v1827
        %1917 = vst.msk [vmem:[%s261 + $0x80] sm:$0xff] %vm1908, %v1829
        %1918 = vst.msk [vmem:[%s261 + $0x90] sm:$0xff] %vm1908, %v1831
        %1919 = vst.msk [vmem:[%s261 + $0xa0] sm:$0xff] %vm1908, %v1833
        %1920 = vst.msk [vmem:[%s261 + $0xb0] sm:$0xff] %vm1908, %v1835
        %1921 = vst.msk [vmem:[%s261 + $0xc0] sm:$0xff] %vm1908, %v1837
        %1922 = vst.msk [vmem:[%s261 + $0xd0] sm:$0xff] %vm1908, %v1839
        %1923 = vst.msk [vmem:[%s261 + $0xe0] sm:$0xff] %vm1908, %v1841
        %1924 = vst.msk [vmem:[%s261 + $0xf0] sm:$0xff] %vm1908, %v1843
        %1925 = vst.msk [vmem:[%s261 + $0x100] sm:$0xff] %vm1908, %v1845
        %1926 = vst.msk [vmem:[%s261 + $0x110] sm:$0xff] %vm1908, %v1847
        %1927 = vst.msk [vmem:[%s261 + $0x120] sm:$0xff] %vm1908, %v1849
        %1928 = vst.msk [vmem:[%s261 + $0x130] sm:$0xff] %vm1908, %v1851
        %1929 = vst.msk [vmem:[%s261 + $0x140] sm:$0xff] %vm1908, %v1853
        %1930 = vst.msk [vmem:[%s261 + $0x150] sm:$0xff] %vm1908, %v1855
        %1931 = vst.msk [vmem:[%s261 + $0x160] sm:$0xff] %vm1908, %v1857
        %1932 = vst.msk [vmem:[%s261 + $0x170] sm:$0xff] %vm1908, %v1859
        %1933 = vst.msk [vmem:[%s261 + $0x180] sm:$0xff] %vm1908, %v1861
        %1934 = vst.msk [vmem:[%s261 + $0x190] sm:$0xff] %vm1908, %v1863
        %1935 = vst.msk [vmem:[%s261 + $0x1a0] sm:$0xff] %vm1908, %v1865
        %1936 = vst.msk [vmem:[%s261 + $0x1b0] sm:$0xff] %vm1908, %v1867
        %1937 = vst.msk [vmem:[%s261 + $0x1c0] sm:$0xff] %vm1908, %v1869
        %1938 = vst.msk [vmem:[%s261 + $0x1d0] sm:$0xff] %vm1908, %v1871
        %1939 = vst.msk [vmem:[%s261 + $0x1e0] sm:$0xff] %vm1908, %v1873
        %1940 = vst.msk [vmem:[%s261 + $0x1f0] sm:$0xff] %vm1908, %v1875
        %1941 = vst.msk [vmem:[%s261 + $0x8] sm:$0xff] %vm1009, %v851
        %1942 = vst.msk [vmem:[%s261 + $0x18] sm:$0xff] %vm1009, %v856
        %1943 = vst.msk [vmem:[%s261 + $0x28] sm:$0xff] %vm1009, %v861
        %1944 = vst.msk [vmem:[%s261 + $0x38] sm:$0xff] %vm1009, %v866
        %1945 = vst.msk [vmem:[%s261 + $0x48] sm:$0xff] %vm1009, %v871
        %1946 = vst.msk [vmem:[%s261 + $0x58] sm:$0xff] %vm1009, %v876
        %1947 = vst.msk [vmem:[%s261 + $0x68] sm:$0xff] %vm1009, %v881
        %1948 = vst.msk [vmem:[%s261 + $0x78] sm:$0xff] %vm1009, %v886
        %1949 = vst.msk [vmem:[%s261 + $0x88] sm:$0xff] %vm1009, %v891
        %1950 = vst.msk [vmem:[%s261 + $0x98] sm:$0xff] %vm1009, %v896
        %1951 = vst.msk [vmem:[%s261 + $0xa8] sm:$0xff] %vm1009, %v901
        %1952 = vst.msk [vmem:[%s261 + $0xb8] sm:$0xff] %vm1009, %v906
        %1953 = vst.msk [vmem:[%s261 + $0xc8] sm:$0xff] %vm1009, %v911
        %1954 = vst.msk [vmem:[%s261 + $0xd8] sm:$0xff] %vm1009, %v916
        %1955 = vst.msk [vmem:[%s261 + $0xe8] sm:$0xff] %vm1009, %v921
        %1956 = vst.msk [vmem:[%s261 + $0xf8] sm:$0xff] %vm1009, %v926
        %1957 = vst.msk [vmem:[%s261 + $0x108] sm:$0xff] %vm1009, %v931
        %1958 = vst.msk [vmem:[%s261 + $0x118] sm:$0xff] %vm1009, %v936
        %1959 = vst.msk [vmem:[%s261 + $0x128] sm:$0xff] %vm1009, %v941
        %1960 = vst.msk [vmem:[%s261 + $0x138] sm:$0xff] %vm1009, %v946
        %1961 = vst.msk [vmem:[%s261 + $0x148] sm:$0xff] %vm1009, %v951
        %1962 = vst.msk [vmem:[%s261 + $0x158] sm:$0xff] %vm1009, %v956
        %1963 = vst.msk [vmem:[%s261 + $0x168] sm:$0xff] %vm1009, %v961
        %1964 = vst.msk [vmem:[%s261 + $0x178] sm:$0xff] %vm1009, %v966
        %1965 = vst.msk [vmem:[%s261 + $0x188] sm:$0xff] %vm1009, %v971
        %1966 = vst.msk [vmem:[%s261 + $0x198] sm:$0xff] %vm1009, %v976
        %1967 = vst.msk [vmem:[%s261 + $0x1a8] sm:$0xff] %vm1009, %v981
        %1968 = vst.msk [vmem:[%s261 + $0x1b8] sm:$0xff] %vm1009, %v986
        %1969 = vst.msk [vmem:[%s261 + $0x1c8] sm:$0xff] %vm1009, %v991
        %1970 = vst.msk [vmem:[%s261 + $0x1d8] sm:$0xff] %vm1009, %v996
        %1971 = vst.msk [vmem:[%s261 + $0x1e8] sm:$0xff] %vm1009, %v1001
        %1972 = vst.msk [vmem:[%s261 + $0x1f8] sm:$0xff] %vm1009, %v1006
        %2005 = vrot.lane.b32.xlu0 %v1330, 16
        %v2006 = vpop.permute.xlu0 %2005
        %2007 = vrot.lane.b32.xlu0 %v1331, 16
        %v2008 = vpop.permute.xlu0 %2007
        %2009 = vrot.lane.b32.xlu0 %v1332, 16
        %v2010 = vpop.permute.xlu0 %2009
        %2011 = vrot.lane.b32.xlu0 %v1333, 16
        %v2012 = vpop.permute.xlu0 %2011
        %2013 = vrot.lane.b32.xlu0 %v1334, 16
        %v2014 = vpop.permute.xlu0 %2013
        %2015 = vrot.lane.b32.xlu0 %v1335, 16
        %v2016 = vpop.permute.xlu0 %2015
        %2017 = vrot.lane.b32.xlu0 %v1336, 16
        %v2018 = vpop.permute.xlu0 %2017
        %2019 = vrot.lane.b32.xlu0 %v1337, 16
        %v2020 = vpop.permute.xlu0 %2019
        %2021 = vrot.lane.b32.xlu0 %v1338, 16
        %v2022 = vpop.permute.xlu0 %2021
        %2023 = vrot.lane.b32.xlu0 %v1339, 16
        %v2024 = vpop.permute.xlu0 %2023
        %2025 = vrot.lane.b32.xlu0 %v1340, 16
        %v2026 = vpop.permute.xlu0 %2025
        %2027 = vrot.lane.b32.xlu0 %v1341, 16
        %v2028 = vpop.permute.xlu0 %2027
        %2029 = vrot.lane.b32.xlu0 %v1342, 16
        %v2030 = vpop.permute.xlu0 %2029
        %2031 = vrot.lane.b32.xlu0 %v1343, 16
        %v2032 = vpop.permute.xlu0 %2031
        %2033 = vrot.lane.b32.xlu0 %v1344, 16
        %v2034 = vpop.permute.xlu0 %2033
        %2035 = vrot.lane.b32.xlu0 %v1345, 16
        %v2036 = vpop.permute.xlu0 %2035
        %2037 = vrot.lane.b32.xlu0 %v1346, 16
        %v2038 = vpop.permute.xlu0 %2037
        %2039 = vrot.lane.b32.xlu0 %v1347, 16
        %v2040 = vpop.permute.xlu0 %2039
        %2041 = vrot.lane.b32.xlu0 %v1348, 16
        %v2042 = vpop.permute.xlu0 %2041
        %2043 = vrot.lane.b32.xlu0 %v1349, 16
        %v2044 = vpop.permute.xlu0 %2043
        %2045 = vrot.lane.b32.xlu0 %v1350, 16
        %v2046 = vpop.permute.xlu0 %2045
        %2047 = vrot.lane.b32.xlu0 %v1351, 16
        %v2048 = vpop.permute.xlu0 %2047
        %2049 = vrot.lane.b32.xlu0 %v1352, 16
        %v2050 = vpop.permute.xlu0 %2049
        %2051 = vrot.lane.b32.xlu0 %v1353, 16
        %v2052 = vpop.permute.xlu0 %2051
        %2053 = vrot.lane.b32.xlu0 %v1354, 16
        %v2054 = vpop.permute.xlu0 %2053
        %2055 = vrot.lane.b32.xlu0 %v1355, 16
        %v2056 = vpop.permute.xlu0 %2055
        %2057 = vrot.lane.b32.xlu0 %v1356, 16
        %v2058 = vpop.permute.xlu0 %2057
        %2059 = vrot.lane.b32.xlu0 %v1357, 16
        %v2060 = vpop.permute.xlu0 %2059
        %2061 = vrot.lane.b32.xlu0 %v1358, 16
        %v2062 = vpop.permute.xlu0 %2061
        %2063 = vrot.lane.b32.xlu0 %v1359, 16
        %v2064 = vpop.permute.xlu0 %2063
        %2065 = vrot.lane.b32.xlu0 %v1360, 16
        %v2066 = vpop.permute.xlu0 %2065
        %2067 = vrot.lane.b32.xlu0 %v1361, 16
        %v2068 = vpop.permute.xlu0 %2067
        %vm2101 = vcmask 261248
        %2102 = vst.msk [vmem:[%s261 + $0x8] sm:$0xff] %vm2101, %v2006
        %2103 = vst.msk [vmem:[%s261 + $0x18] sm:$0xff] %vm2101, %v2008
        %2104 = vst.msk [vmem:[%s261 + $0x28] sm:$0xff] %vm2101, %v2010
        %2105 = vst.msk [vmem:[%s261 + $0x38] sm:$0xff] %vm2101, %v2012
        %2106 = vst.msk [vmem:[%s261 + $0x48] sm:$0xff] %vm2101, %v2014
        %2107 = vst.msk [vmem:[%s261 + $0x58] sm:$0xff] %vm2101, %v2016
        %2108 = vst.msk [vmem:[%s261 + $0x68] sm:$0xff] %vm2101, %v2018
        %2109 = vst.msk [vmem:[%s261 + $0x78] sm:$0xff] %vm2101, %v2020
        %2110 = vst.msk [vmem:[%s261 + $0x88] sm:$0xff] %vm2101, %v2022
        %2111 = vst.msk [vmem:[%s261 + $0x98] sm:$0xff] %vm2101, %v2024
        %2112 = vst.msk [vmem:[%s261 + $0xa8] sm:$0xff] %vm2101, %v2026
        %2113 = vst.msk [vmem:[%s261 + $0xb8] sm:$0xff] %vm2101, %v2028
        %2114 = vst.msk [vmem:[%s261 + $0xc8] sm:$0xff] %vm2101, %v2030
        %2115 = vst.msk [vmem:[%s261 + $0xd8] sm:$0xff] %vm2101, %v2032
        %2116 = vst.msk [vmem:[%s261 + $0xe8] sm:$0xff] %vm2101, %v2034
        %2117 = vst.msk [vmem:[%s261 + $0xf8] sm:$0xff] %vm2101, %v2036
        %2118 = vst.msk [vmem:[%s261 + $0x108] sm:$0xff] %vm2101, %v2038
        %2119 = vst.msk [vmem:[%s261 + $0x118] sm:$0xff] %vm2101, %v2040
        %2120 = vst.msk [vmem:[%s261 + $0x128] sm:$0xff] %vm2101, %v2042
        %2121 = vst.msk [vmem:[%s261 + $0x138] sm:$0xff] %vm2101, %v2044
        %2122 = vst.msk [vmem:[%s261 + $0x148] sm:$0xff] %vm2101, %v2046
        %2123 = vst.msk [vmem:[%s261 + $0x158] sm:$0xff] %vm2101, %v2048
        %2124 = vst.msk [vmem:[%s261 + $0x168] sm:$0xff] %vm2101, %v2050
        %2125 = vst.msk [vmem:[%s261 + $0x178] sm:$0xff] %vm2101, %v2052
        %2126 = vst.msk [vmem:[%s261 + $0x188] sm:$0xff] %vm2101, %v2054
        %2127 = vst.msk [vmem:[%s261 + $0x198] sm:$0xff] %vm2101, %v2056
        %2128 = vst.msk [vmem:[%s261 + $0x1a8] sm:$0xff] %vm2101, %v2058
        %2129 = vst.msk [vmem:[%s261 + $0x1b8] sm:$0xff] %vm2101, %v2060
        %2130 = vst.msk [vmem:[%s261 + $0x1c8] sm:$0xff] %vm2101, %v2062
        %2131 = vst.msk [vmem:[%s261 + $0x1d8] sm:$0xff] %vm2101, %v2064
        %2132 = vst.msk [vmem:[%s261 + $0x1e8] sm:$0xff] %vm2101, %v2066
        %2133 = vst.msk [vmem:[%s261 + $0x1f8] sm:$0xff] %vm2101, %v2068
        %vm2134 = vcmask 269568
        %2135 = vst.msk [vmem:[%s261 + $0x8] sm:$0xff] %vm2134, %v1748
        %2136 = vst.msk [vmem:[%s261 + $0x18] sm:$0xff] %vm2134, %v1749
        %2137 = vst.msk [vmem:[%s261 + $0x28] sm:$0xff] %vm2134, %v1750
        %2138 = vst.msk [vmem:[%s261 + $0x38] sm:$0xff] %vm2134, %v1751
        %2139 = vst.msk [vmem:[%s261 + $0x48] sm:$0xff] %vm2134, %v1752
        %2140 = vst.msk [vmem:[%s261 + $0x58] sm:$0xff] %vm2134, %v1753
        %2141 = vst.msk [vmem:[%s261 + $0x68] sm:$0xff] %vm2134, %v1754
        %2142 = vst.msk [vmem:[%s261 + $0x78] sm:$0xff] %vm2134, %v1755
        %2143 = vst.msk [vmem:[%s261 + $0x88] sm:$0xff] %vm2134, %v1756
        %2144 = vst.msk [vmem:[%s261 + $0x98] sm:$0xff] %vm2134, %v1757
        %2145 = vst.msk [vmem:[%s261 + $0xa8] sm:$0xff] %vm2134, %v1758
        %2146 = vst.msk [vmem:[%s261 + $0xb8] sm:$0xff] %vm2134, %v1759
        %2147 = vst.msk [vmem:[%s261 + $0xc8] sm:$0xff] %vm2134, %v1760
        %2148 = vst.msk [vmem:[%s261 + $0xd8] sm:$0xff] %vm2134, %v1761
        %2149 = vst.msk [vmem:[%s261 + $0xe8] sm:$0xff] %vm2134, %v1762
        %2150 = vst.msk [vmem:[%s261 + $0xf8] sm:$0xff] %vm2134, %v1763
        %2151 = vst.msk [vmem:[%s261 + $0x108] sm:$0xff] %vm2134, %v1764
        %2152 = vst.msk [vmem:[%s261 + $0x118] sm:$0xff] %vm2134, %v1765
        %2153 = vst.msk [vmem:[%s261 + $0x128] sm:$0xff] %vm2134, %v1766
        %2154 = vst.msk [vmem:[%s261 + $0x138] sm:$0xff] %vm2134, %v1767
        %2155 = vst.msk [vmem:[%s261 + $0x148] sm:$0xff] %vm2134, %v1768
        %2156 = vst.msk [vmem:[%s261 + $0x158] sm:$0xff] %vm2134, %v1769
        %2157 = vst.msk [vmem:[%s261 + $0x168] sm:$0xff] %vm2134, %v1770
        %2158 = vst.msk [vmem:[%s261 + $0x178] sm:$0xff] %vm2134, %v1771
        %2159 = vst.msk [vmem:[%s261 + $0x188] sm:$0xff] %vm2134, %v1772
        %2160 = vst.msk [vmem:[%s261 + $0x198] sm:$0xff] %vm2134, %v1773
        %2161 = vst.msk [vmem:[%s261 + $0x1a8] sm:$0xff] %vm2134, %v1774
        %2162 = vst.msk [vmem:[%s261 + $0x1b8] sm:$0xff] %vm2134, %v1775
        %2163 = vst.msk [vmem:[%s261 + $0x1c8] sm:$0xff] %vm2134, %v1776
        %2164 = vst.msk [vmem:[%s261 + $0x1d8] sm:$0xff] %vm2134, %v1777
        %2165 = vst.msk [vmem:[%s261 + $0x1e8] sm:$0xff] %vm2134, %v1778
        %2166 = vst.msk [vmem:[%s261 + $0x1f8] sm:$0xff] %vm2134, %v1779
        %s2167 = sand.u32 %s164, 1
        %s2168 = scalar_lea.sflag [#allocation3], %s2167
        %s2169 = sand.u32 %s164, 1
        %s2170 = smul.addr %s2169, 512
        %s2171 = scalar_lea.vmem [#allocation2], %s2170
        // Predicated region
        $region45: #{tpu_custom_call.1} parent=43 // pred_check
          %p2172 = pneg %p174
        $region46: #{tpu_custom_call.1} parent=43 // pred_check_branch
          %2174 = sbr.rel (%p2172) target = $region48
        $region47: #{tpu_custom_call.1} parent=43 // pred_region
          %s2175 = smul.u32 32, %s20
          %s2177 = ssub.s32 8192, 8192
          %2178 = vsyncadd %s2168, %s2177
          %s2179 = smul.addr %s2175, 2
          %s2180 = smul.addr %s2179, 128
          %s2181 = scalar_lea.hbm %s6, %s2180
          %s2182 = sshll.u32 %s2171, 4
          %s2183 = int_to_ptr.vmem [resolvable:$true] %s2182
          %2188 = dma.vmem_to_hbm [thread:$0]  %s2183, 8192, %s2181, %s2168, 256, 256, 16
        $region48: #{tpu_custom_call.1} parent=43 // pred_fallthru
          _
      $region44: #{tpu_custom_call.1} parent=5 // pred_fallthru
        _
      %p2189 = scmp.le.s32.totalorder 2, %s15
      // Predicated region
      $region49: #{tpu_custom_call.1} parent=5 // pred_check
        %p2190 = pneg %p2189
      $region50: #{tpu_custom_call.1} parent=5 // pred_check_branch
        %2192 = sbr.rel (%p2190) target = $region52
      $region51: #{tpu_custom_call.1} parent=5 // pred_region
        %s2193 = ssub.s32 %s15, 2
        // Predicated region
        $region53: #{tpu_custom_call.1} parent=51 // pred_check
          %p2194 = pneg %p180
        $region54: #{tpu_custom_call.1} parent=51 // pred_check_branch
          %2196 = sbr.rel (%p2194) target = $region56
        $region55: #{tpu_custom_call.1} parent=51 // pred_region
          %s2197 = sand.u32 %s165, 1
          %s2198 = scalar_lea.sflag [#allocation3], %s2197
          %s2199 = sand.u32 %s165, 1
          %s2200 = smul.addr %s2199, 512
          %s2201 = scalar_lea.vmem [#allocation2], %s2200
          %2202 = dma.done %s2198, 8192
        $region56: #{tpu_custom_call.1} parent=51 // pred_fallthru
          _
      $region52: #{tpu_custom_call.1} parent=5 // pred_fallthru
        _
    $region6: #{tpu_custom_call.1} parent=1 // loop_footer
      %s19 = sadd.s32 1, %s15
    $region7: #{tpu_custom_call.1} parent=1 // loop_footer_branch
      %14 = sbr.rel target = $region3
    $region8: #{tpu_custom_call.1} parent=1 // loop_exit
      _
    %2203 = vsyncpa [#allocation3], 1
    %s2204 = scalar_lea.sflag [#allocation3], 1
    %2205 = vsyncpa %s2204, 1

</llo_original>
